<compile_context>
chip_gen: v5e
topology: v5e:2x2
jax: 0.10.0
libtpu: 0.0.40
codegen_flags: <defaults>
</compile_context>

<pallas_src>
import jax
import jax.numpy as jnp
from jax.experimental import pallas as pl
from jax.experimental.pallas import tpu as pltpu


# ---------------------------------------------------------------------------
# Fused kernel: conv stack -> attention -> masked softmax -> pooling -> losses
# ---------------------------------------------------------------------------
def fused_modeler_kernel(x_ref, gm_ref, sm_ref, nf_ref, nl_ref, tgt_ref,
                         w1_ref, b1_ref, w2_ref, b2_ref, wa_ref, ba_ref,
                         loss_ref):
    B, Lg, _ = gm_ref.shape
    _, Ls, _ = sm_ref.shape
    Rg = B * Lg

    x = x_ref[...]                # (R, E): gram rows (b-major) then sent rows
    notfirst = nf_ref[...]        # (R, 1): 1.0 where l > 0   within its sample
    notlast = nl_ref[...]         # (R, 1): 1.0 where l < L-1 within its sample

    def conv3(h, w, b):
        # Conv1d(kernel=3, padding=1) as ONE matmul with K = 3*C.
        # roll(h,+1)[r] = h[r-1] -> x[l-1] tap; roll(h,n-1)[r] = h[r+1] -> x[l+1].
        # Boundary masks zero the taps at l==0 / l==L-1 (and across samples /
        # across the gram|sent boundary), so the row flattening is exact.
        n = h.shape[0]
        left = pltpu.roll(h, shift=1, axis=0) * notfirst              # x[l-1]
        right = pltpu.roll(h, shift=n - 1, axis=0) * notlast          # x[l+1]
        taps = jnp.concatenate([left, h, right], axis=1)              # (R, 3C)
        return jnp.dot(taps, w, preferred_element_type=jnp.float32) + b

    h1 = jnp.tanh(conv3(x, w1_ref[...], b1_ref[...]))                 # (R, 100)
    h2 = jnp.tanh(conv3(h1, w2_ref[...], b2_ref[...]))                # (R, 50)
    C2 = h2.shape[1]

    # ---- packed attention logits: ONE matmul serves both encoders ----------
    #   columns [0:2] = sent_attention (Linear(50,2)), column [2:3] = gram.
    logits = (jnp.dot(h2, wa_ref[...], preferred_element_type=jnp.float32)
              + ba_ref[...])                                           # (R, 3)

    # ---- masked softmax (reference form: no max-sub, +1e-5 in denom) + pool -
    def softmax_pool(att_flat, h2_flat, m_ref, L):
        A = att_flat.shape[1]
        att = att_flat.reshape(B, L, A)
        h2_3d = h2_flat.reshape(B, L, C2)
        exps = jnp.exp(att) * m_ref[...]
        att_sm = exps / (jnp.sum(exps, axis=1, keepdims=True) + 1e-5)
        # attention pooling: one (B, 1, C2) vector per attention column
        vecs = [jnp.sum(att_sm[:, :, k:k + 1] * h2_3d, axis=1, keepdims=True)
                for k in range(A)]
        return vecs, att_sm

    (g_vec,), _ = softmax_pool(logits[:Rg, 2:3], h2[:Rg], gm_ref, Lg)
    (s_vec0, s_vec1), s_att = softmax_pool(logits[Rg:, 0:2], h2[Rg:], sm_ref, Ls)

    # ---- loss1: BCE(clamped max cosine similarity, target) -----------------
    def cosine(g, s):
        # nn.CosineSimilarity(dim=2, eps=1e-6): num / max(|g||s|, eps)
        num = jnp.sum(g * s, axis=2)
        gg = jnp.sum(g * g, axis=2)
        ss = jnp.sum(s * s, axis=2)
        return num / jnp.sqrt(jnp.maximum(gg * ss, 1e-12))            # (B, 1)

    p = jnp.clip(jnp.maximum(cosine(g_vec, s_vec0), cosine(g_vec, s_vec1)),
                 0.0, 1.0)                                             # (B, 1)
    tgt = tgt_ref[...]
    logp = jnp.maximum(jnp.log(p), -100.0)            # PyTorch BCE log clamp
    log1mp = jnp.maximum(jnp.log(1.0 - p), -100.0)
    loss1 = -jnp.mean(tgt * logp + (1.0 - tgt) * log1mp)

    # ---- loss2: mean off-diagonal attention similarity ----------------------
    # attention_similarity(sent_att.transpose(0,1)) without materializing the
    # transpose: sim[b, d, l] = <att[b,l,:], att[d,l,:]> / (|.||.| + 1e-4)
    mag = jnp.sqrt(jnp.sum(s_att * s_att, axis=2))                     # (B, Ls)
    num2 = jnp.sum(s_att[:, None, :, :] * s_att[None, :, :, :], axis=3)
    den2 = mag[:, None, :] * mag[None, :, :] + 1e-4
    r = jax.lax.broadcasted_iota(jnp.int32, (B, B), 0)
    c = jax.lax.broadcasted_iota(jnp.int32, (B, B), 1)
    offdiag = (r != c).astype(jnp.float32)                             # zero diag
    sim = jnp.clip((num2 / den2) * offdiag[:, :, None], 0.0, 1.0)
    loss2 = jnp.sum(sim) / (B * B * Ls)

    loss_ref[...] = jnp.broadcast_to(loss1 + 0.01 * loss2, (1, 1))


# ---------------------------------------------------------------------------
# Wrapper: weight packing, row flattening, boundary masks, one pallas_call
# ---------------------------------------------------------------------------
def modeler_forward(gram_vecs, sent_vecs, gram_masks, sent_masks, target, params):
    w1, b1, w2, b2, wa_s, ba_s, wa_g, ba_g = params
    B, Lg, E = gram_vecs.shape
    _, Ls, _ = sent_vecs.shape
    C1 = w1.shape[2]
    C2 = w2.shape[2]

    # Pack (3, Cin, Cout) conv weights to (3*Cin, Cout): each conv layer is one
    # MXU matmul against the [x(l-1) | x(l) | x(l+1)] tap block.
    # (From PyTorch: conv.weight (Cout, Cin, 3) -> permute(2, 1, 0).)
    w1p = w1.reshape(3 * E, C1)
    w2p = w2.reshape(3 * C1, C2)
    # Pack both attention heads: columns [0:2]=sent, [2:3]=gram.
    wa_pack = jnp.concatenate([wa_s, wa_g], axis=1)                   # (C2, 3)
    ba_pack = jnp.concatenate([ba_s, ba_g], axis=1)                   # (1, 3)

    # Flatten gram+sent sequences channel-last into a single row block (XLA-side
    # copy, keeps the concat out of the serial kernel).
    x_all = jnp.concatenate([gram_vecs.reshape(B * Lg, E),
                             sent_vecs.reshape(B * Ls, E)], axis=0)   # (R, E)

    gm = gram_masks.reshape(B, Lg, 1).astype(jnp.float32)
    sm = sent_masks.reshape(B, Ls, 1).astype(jnp.float32)
    tgt = target.astype(jnp.float32).reshape(B, 1)

    # Precomputed conv boundary masks for the flattened (B*Lg + B*Ls) rows.
    pos_g = jnp.arange(Lg, dtype=jnp.int32)
    pos_s = jnp.arange(Ls, dtype=jnp.int32)
    notfirst = jnp.concatenate([jnp.tile(pos_g != 0, B),
                                jnp.tile(pos_s != 0, B)]).astype(jnp.float32)
    notlast = jnp.concatenate([jnp.tile(pos_g != Lg - 1, B),
                               jnp.tile(pos_s != Ls - 1, B)]).astype(jnp.float32)
    notfirst = notfirst.reshape(-1, 1)
    notlast = notlast.reshape(-1, 1)

    args = (x_all, gm, sm, notfirst, notlast, tgt,
            w1p, b1, w2p, b2, wa_pack, ba_pack)

    R = B * (Lg + Ls)
    cost = pl.CostEstimate(
        flops=2 * R * 3 * (E * C1 + C1 * C2) + 2 * R * C2 * 3
              + 2 * B * B * Ls * 2 + 6 * B * C2,
        transcendentals=R * (C1 + C2 + 3),
        bytes_accessed=sum(int(a.size) * 4 for a in args) + 4,
    )

    # Single fused kernel, no grid: every operand fits VMEM whole (tens of KB),
    # so default whole-array VMEM blocks are used and only the scalar loss is
    # written back to HBM.
    loss = pl.pallas_call(
        fused_modeler_kernel,
        out_shape=jax.ShapeDtypeStruct((1, 1), jnp.float32),
        cost_estimate=cost,
    )(*args)
    return loss[0, 0]


if __name__ == "__main__":
    B, Lg, Ls, E = 4, 8, 16, 30   # emb_size=30; conv dims 30->100->50 per module
    C1, C2 = 100, 50
    key = jax.random.PRNGKey(0)
    ks = jax.random.split(key, 12)
    scale = 0.1

    # Deterministic synthetic parameters (shapes from Modeler.__init__), stored
    # pre-transposed for the channel-last layout: conv weight (K=3, Cin, Cout).
    w1 = jax.random.normal(ks[0], (3, E, C1), jnp.float32) * scale
    b1 = jax.random.normal(ks[1], (1, C1), jnp.float32) * scale
    w2 = jax.random.normal(ks[2], (3, C1, C2), jnp.float32) * scale
    b2 = jax.random.normal(ks[3], (1, C2), jnp.float32) * scale
    wa_sent = jax.random.normal(ks[4], (C2, 2), jnp.float32) * scale  # Linear(50, 2)
    ba_sent = jax.random.normal(ks[5], (1, 2), jnp.float32) * scale
    wa_gram = jax.random.normal(ks[6], (C2, 1), jnp.float32) * scale  # Linear(50, 1)
    ba_gram = jax.random.normal(ks[7], (1, 1), jnp.float32) * scale
    params = (w1, b1, w2, b2, wa_sent, ba_sent, wa_gram, ba_gram)

    # Deterministic synthetic inputs.
    gram_vecs = jax.random.normal(ks[8], (B, Lg, E), jnp.float32)
    sent_vecs = jax.random.normal(ks[9], (B, Ls, E), jnp.float32)
    gram_masks = (jax.random.uniform(ks[10], (B, Lg)) < 0.8).astype(jnp.float32)
    gram_masks = gram_masks.at[:, 0].set(1.0)
    sent_masks = (jax.random.uniform(ks[11], (B, Ls)) < 0.8).astype(jnp.float32)
    sent_masks = sent_masks.at[:, 0].set(1.0)
    target = jnp.array([1, 0, 1, 0], dtype=jnp.int32)

    forward = jax.jit(modeler_forward)
    loss = forward(gram_vecs, sent_vecs, gram_masks, sent_masks, target, params)
    jax.block_until_ready(loss)
    print("KERNEL_OK")
</pallas_src>

<mosaic_0001>
module attributes {stable_mosaic.version = 11 : i64} {
  func.func @fused_modeler_kernel(%arg0: memref<96x30xf32, #tpu.memory_space<vmem>>, %arg1: memref<4x8x1xf32, #tpu.memory_space<vmem>>, %arg2: memref<4x16x1xf32, #tpu.memory_space<vmem>>, %arg3: memref<96x1xf32, #tpu.memory_space<vmem>>, %arg4: memref<96x1xf32, #tpu.memory_space<vmem>>, %arg5: memref<4x1xf32, #tpu.memory_space<vmem>>, %arg6: memref<90x100xf32, #tpu.memory_space<vmem>>, %arg7: memref<1x100xf32, #tpu.memory_space<vmem>>, %arg8: memref<300x50xf32, #tpu.memory_space<vmem>>, %arg9: memref<1x50xf32, #tpu.memory_space<vmem>>, %arg10: memref<50x3xf32, #tpu.memory_space<vmem>>, %arg11: memref<1x3xf32, #tpu.memory_space<vmem>>, %arg12: memref<1x1xf32, #tpu.memory_space<vmem>>) attributes {dimension_semantics = [], scalar_prefetch = 0 : i64, scratch_operands = 0 : i64, tpu.core_type = #tpu.core_type<tc>} {
    %c0 = arith.constant 0 : index
    %c0_0 = arith.constant 0 : index
    %0 = vector.load %arg0[%c0, %c0_0] : memref<96x30xf32, #tpu.memory_space<vmem>>, vector<96x30xf32>
    %c0_1 = arith.constant 0 : index
    %c0_2 = arith.constant 0 : index
    %1 = vector.load %arg3[%c0_1, %c0_2] : memref<96x1xf32, #tpu.memory_space<vmem>>, vector<96x1xf32>
    %c0_3 = arith.constant 0 : index
    %c0_4 = arith.constant 0 : index
    %2 = vector.load %arg4[%c0_3, %c0_4] : memref<96x1xf32, #tpu.memory_space<vmem>>, vector<96x1xf32>
    %c0_5 = arith.constant 0 : index
    %c0_6 = arith.constant 0 : index
    %3 = vector.load %arg6[%c0_5, %c0_6] : memref<90x100xf32, #tpu.memory_space<vmem>>, vector<90x100xf32>
    %c0_7 = arith.constant 0 : index
    %c0_8 = arith.constant 0 : index
    %4 = vector.load %arg7[%c0_7, %c0_8] : memref<1x100xf32, #tpu.memory_space<vmem>>, vector<1x100xf32>
    %c1_i32 = arith.constant 1 : i32
    %5 = tpu.dynamic_rotate %0 by %c1_i32 dim 0 : vector<96x30xf32>, i32 -> vector<96x30xf32>
    %6 = vector.broadcast %1 : vector<96x1xf32> to vector<96x30xf32>
    %7 = arith.mulf %5, %6 : vector<96x30xf32>
    %c95_i32 = arith.constant 95 : i32
    %8 = tpu.dynamic_rotate %0 by %c95_i32 dim 0 : vector<96x30xf32>, i32 -> vector<96x30xf32>
    %9 = vector.broadcast %2 : vector<96x1xf32> to vector<96x30xf32>
    %10 = arith.mulf %8, %9 : vector<96x30xf32>
    %11 = tpu.concatenate %7, %0, %10 in 1 : vector<96x30xf32>, vector<96x30xf32>, vector<96x30xf32> -> vector<96x90xf32>
    %cst = arith.constant dense<0.000000e+00> : vector<96x100xf32>
    %12 = tpu.matmul %11, %3, %cst {dimension_numbers = #tpu.dot_dimension_numbers<[1], [0], [0], [1], [0, 0, 1, 1], [], []>} : vector<96x90xf32>, vector<90x100xf32>, vector<96x100xf32> -> vector<96x100xf32>
    %13 = vector.broadcast %4 : vector<1x100xf32> to vector<96x100xf32>
    %14 = arith.addf %12, %13 : vector<96x100xf32>
    %15 = math.tanh %14 : vector<96x100xf32>
    %c0_9 = arith.constant 0 : index
    %c0_10 = arith.constant 0 : index
    %16 = vector.load %arg8[%c0_9, %c0_10] : memref<300x50xf32, #tpu.memory_space<vmem>>, vector<300x50xf32>
    %c0_11 = arith.constant 0 : index
    %c0_12 = arith.constant 0 : index
    %17 = vector.load %arg9[%c0_11, %c0_12] : memref<1x50xf32, #tpu.memory_space<vmem>>, vector<1x50xf32>
    %c1_i32_13 = arith.constant 1 : i32
    %18 = tpu.dynamic_rotate %15 by %c1_i32_13 dim 0 : vector<96x100xf32>, i32 -> vector<96x100xf32>
    %19 = vector.broadcast %1 : vector<96x1xf32> to vector<96x100xf32>
    %20 = arith.mulf %18, %19 : vector<96x100xf32>
    %c95_i32_14 = arith.constant 95 : i32
    %21 = tpu.dynamic_rotate %15 by %c95_i32_14 dim 0 : vector<96x100xf32>, i32 -> vector<96x100xf32>
    %22 = vector.broadcast %2 : vector<96x1xf32> to vector<96x100xf32>
    %23 = arith.mulf %21, %22 : vector<96x100xf32>
    %24 = tpu.concatenate %20, %15, %23 in 1 : vector<96x100xf32>, vector<96x100xf32>, vector<96x100xf32> -> vector<96x300xf32>
    %cst_15 = arith.constant dense<0.000000e+00> : vector<96x50xf32>
    %25 = tpu.matmul %24, %16, %cst_15 {dimension_numbers = #tpu.dot_dimension_numbers<[1], [0], [0], [1], [0, 0, 1, 1], [], []>} : vector<96x300xf32>, vector<300x50xf32>, vector<96x50xf32> -> vector<96x50xf32>
    %26 = vector.broadcast %17 : vector<1x50xf32> to vector<96x50xf32>
    %27 = arith.addf %25, %26 : vector<96x50xf32>
    %28 = math.tanh %27 : vector<96x50xf32>
    %c0_16 = arith.constant 0 : index
    %c0_17 = arith.constant 0 : index
    %29 = vector.load %arg10[%c0_16, %c0_17] : memref<50x3xf32, #tpu.memory_space<vmem>>, vector<50x3xf32>
    %cst_18 = arith.constant dense<0.000000e+00> : vector<96x3xf32>
    %30 = tpu.matmul %28, %29, %cst_18 {dimension_numbers = #tpu.dot_dimension_numbers<[1], [0], [0], [1], [0, 0, 1, 1], [], []>} : vector<96x50xf32>, vector<50x3xf32>, vector<96x3xf32> -> vector<96x3xf32>
    %c0_19 = arith.constant 0 : index
    %c0_20 = arith.constant 0 : index
    %31 = vector.load %arg11[%c0_19, %c0_20] : memref<1x3xf32, #tpu.memory_space<vmem>>, vector<1x3xf32>
    %32 = vector.broadcast %31 : vector<1x3xf32> to vector<96x3xf32>
    %33 = arith.addf %30, %32 : vector<96x3xf32>
    %34 = vector.extract_strided_slice %33 {offsets = [0, 2], sizes = [32, 1], strides = [1, 1]} : vector<96x3xf32> to vector<32x1xf32>
    %35 = vector.extract_strided_slice %28 {offsets = [0, 0], sizes = [32, 50], strides = [1, 1]} : vector<96x50xf32> to vector<32x50xf32>
    %36 = vector.shape_cast %34 : vector<32x1xf32> to vector<4x8x1xf32>
    %37 = vector.shape_cast %35 : vector<32x50xf32> to vector<4x8x50xf32>
    %38 = math.exp %36 : vector<4x8x1xf32>
    %c0_21 = arith.constant 0 : index
    %c0_22 = arith.constant 0 : index
    %c0_23 = arith.constant 0 : index
    %39 = vector.load %arg1[%c0_21, %c0_22, %c0_23] : memref<4x8x1xf32, #tpu.memory_space<vmem>>, vector<4x8x1xf32>
    %40 = arith.mulf %38, %39 : vector<4x8x1xf32>
    %cst_24 = arith.constant dense<0.000000e+00> : vector<4x1xf32>
    %41 = vector.multi_reduction <add>, %40, %cst_24 [1] : vector<4x8x1xf32> to vector<4x1xf32>
    %42 = vector.shape_cast %41 : vector<4x1xf32> to vector<4x1x1xf32>
    %cst_25 = arith.constant 9.99999974E-6 : f32
    %43 = vector.broadcast %cst_25 : f32 to vector<4x1x1xf32>
    %44 = arith.addf %42, %43 : vector<4x1x1xf32>
    %45 = vector.broadcast %44 : vector<4x1x1xf32> to vector<4x8x1xf32>
    %46 = arith.divf %40, %45 : vector<4x8x1xf32>
    %47 = vector.broadcast %46 : vector<4x8x1xf32> to vector<4x8x50xf32>
    %48 = arith.mulf %47, %37 : vector<4x8x50xf32>
    %cst_26 = arith.constant dense<0.000000e+00> : vector<4x50xf32>
    %49 = vector.multi_reduction <add>, %48, %cst_26 [1] : vector<4x8x50xf32> to vector<4x50xf32>
    %50 = vector.shape_cast %49 : vector<4x50xf32> to vector<4x1x50xf32>
    %51 = vector.extract_strided_slice %33 {offsets = [32, 0], sizes = [64, 2], strides = [1, 1]} : vector<96x3xf32> to vector<64x2xf32>
    %52 = vector.extract_strided_slice %28 {offsets = [32, 0], sizes = [64, 50], strides = [1, 1]} : vector<96x50xf32> to vector<64x50xf32>
    %53 = vector.shape_cast %51 : vector<64x2xf32> to vector<4x16x2xf32>
    %54 = vector.shape_cast %52 : vector<64x50xf32> to vector<4x16x50xf32>
    %55 = math.exp %53 : vector<4x16x2xf32>
    %c0_27 = arith.constant 0 : index
    %c0_28 = arith.constant 0 : index
    %c0_29 = arith.constant 0 : index
    %56 = vector.load %arg2[%c0_27, %c0_28, %c0_29] : memref<4x16x1xf32, #tpu.memory_space<vmem>>, vector<4x16x1xf32>
    %57 = vector.broadcast %56 : vector<4x16x1xf32> to vector<4x16x2xf32>
    %58 = arith.mulf %55, %57 : vector<4x16x2xf32>
    %cst_30 = arith.constant dense<0.000000e+00> : vector<4x2xf32>
    %59 = vector.multi_reduction <add>, %58, %cst_30 [1] : vector<4x16x2xf32> to vector<4x2xf32>
    %60 = vector.shape_cast %59 : vector<4x2xf32> to vector<4x1x2xf32>
    %cst_31 = arith.constant 9.99999974E-6 : f32
    %61 = vector.broadcast %cst_31 : f32 to vector<4x1x2xf32>
    %62 = arith.addf %60, %61 : vector<4x1x2xf32>
    %63 = vector.broadcast %62 : vector<4x1x2xf32> to vector<4x16x2xf32>
    %64 = arith.divf %58, %63 : vector<4x16x2xf32>
    %65 = vector.extract_strided_slice %64 {offsets = [0, 0, 0], sizes = [4, 16, 1], strides = [1, 1, 1]} : vector<4x16x2xf32> to vector<4x16x1xf32>
    %66 = vector.broadcast %65 : vector<4x16x1xf32> to vector<4x16x50xf32>
    %67 = arith.mulf %66, %54 : vector<4x16x50xf32>
    %cst_32 = arith.constant dense<0.000000e+00> : vector<4x50xf32>
    %68 = vector.multi_reduction <add>, %67, %cst_32 [1] : vector<4x16x50xf32> to vector<4x50xf32>
    %69 = vector.shape_cast %68 : vector<4x50xf32> to vector<4x1x50xf32>
    %70 = vector.extract_strided_slice %64 {offsets = [0, 0, 1], sizes = [4, 16, 1], strides = [1, 1, 1]} : vector<4x16x2xf32> to vector<4x16x1xf32>
    %71 = vector.broadcast %70 : vector<4x16x1xf32> to vector<4x16x50xf32>
    %72 = arith.mulf %71, %54 : vector<4x16x50xf32>
    %cst_33 = arith.constant dense<0.000000e+00> : vector<4x50xf32>
    %73 = vector.multi_reduction <add>, %72, %cst_33 [1] : vector<4x16x50xf32> to vector<4x50xf32>
    %74 = vector.shape_cast %73 : vector<4x50xf32> to vector<4x1x50xf32>
    %75 = arith.mulf %50, %69 : vector<4x1x50xf32>
    %cst_34 = arith.constant dense<0.000000e+00> : vector<4x1xf32>
    %76 = vector.multi_reduction <add>, %75, %cst_34 [2] : vector<4x1x50xf32> to vector<4x1xf32>
    %77 = arith.mulf %50, %50 : vector<4x1x50xf32>
    %cst_35 = arith.constant dense<0.000000e+00> : vector<4x1xf32>
    %78 = vector.multi_reduction <add>, %77, %cst_35 [2] : vector<4x1x50xf32> to vector<4x1xf32>
    %79 = arith.mulf %69, %69 : vector<4x1x50xf32>
    %cst_36 = arith.constant dense<0.000000e+00> : vector<4x1xf32>
    %80 = vector.multi_reduction <add>, %79, %cst_36 [2] : vector<4x1x50xf32> to vector<4x1xf32>
    %81 = arith.mulf %78, %80 : vector<4x1xf32>
    %cst_37 = arith.constant 9.99999996E-13 : f32
    %82 = vector.broadcast %cst_37 : f32 to vector<4x1xf32>
    %83 = arith.maximumf %81, %82 : vector<4x1xf32>
    %84 = math.sqrt %83 : vector<4x1xf32>
    %85 = arith.divf %76, %84 : vector<4x1xf32>
    %86 = arith.mulf %50, %74 : vector<4x1x50xf32>
    %cst_38 = arith.constant dense<0.000000e+00> : vector<4x1xf32>
    %87 = vector.multi_reduction <add>, %86, %cst_38 [2] : vector<4x1x50xf32> to vector<4x1xf32>
    %88 = arith.mulf %50, %50 : vector<4x1x50xf32>
    %cst_39 = arith.constant dense<0.000000e+00> : vector<4x1xf32>
    %89 = vector.multi_reduction <add>, %88, %cst_39 [2] : vector<4x1x50xf32> to vector<4x1xf32>
    %90 = arith.mulf %74, %74 : vector<4x1x50xf32>
    %cst_40 = arith.constant dense<0.000000e+00> : vector<4x1xf32>
    %91 = vector.multi_reduction <add>, %90, %cst_40 [2] : vector<4x1x50xf32> to vector<4x1xf32>
    %92 = arith.mulf %89, %91 : vector<4x1xf32>
    %cst_41 = arith.constant 9.99999996E-13 : f32
    %93 = vector.broadcast %cst_41 : f32 to vector<4x1xf32>
    %94 = arith.maximumf %92, %93 : vector<4x1xf32>
    %95 = math.sqrt %94 : vector<4x1xf32>
    %96 = arith.divf %87, %95 : vector<4x1xf32>
    %97 = arith.maximumf %85, %96 : vector<4x1xf32>
    %cst_42 = arith.constant 0.000000e+00 : f32
    %cst_43 = arith.constant 1.000000e+00 : f32
    %98 = vector.broadcast %cst_42 : f32 to vector<4x1xf32>
    %99 = arith.maximumf %98, %97 : vector<4x1xf32>
    %100 = vector.broadcast %cst_43 : f32 to vector<4x1xf32>
    %101 = arith.minimumf %100, %99 : vector<4x1xf32>
    %c0_44 = arith.constant 0 : index
    %c0_45 = arith.constant 0 : index
    %102 = vector.load %arg5[%c0_44, %c0_45] : memref<4x1xf32, #tpu.memory_space<vmem>>, vector<4x1xf32>
    %103 = math.log %101 : vector<4x1xf32>
    %cst_46 = arith.constant -1.000000e+02 : f32
    %104 = vector.broadcast %cst_46 : f32 to vector<4x1xf32>
    %105 = arith.maximumf %103, %104 : vector<4x1xf32>
    %cst_47 = arith.constant 1.000000e+00 : f32
    %106 = vector.broadcast %cst_47 : f32 to vector<4x1xf32>
    %107 = arith.subf %106, %101 : vector<4x1xf32>
    %108 = math.log %107 : vector<4x1xf32>
    %cst_48 = arith.constant -1.000000e+02 : f32
    %109 = vector.broadcast %cst_48 : f32 to vector<4x1xf32>
    %110 = arith.maximumf %108, %109 : vector<4x1xf32>
    %111 = arith.mulf %102, %105 : vector<4x1xf32>
    %cst_49 = arith.constant 1.000000e+00 : f32
    %112 = vector.broadcast %cst_49 : f32 to vector<4x1xf32>
    %113 = arith.subf %112, %102 : vector<4x1xf32>
    %114 = arith.mulf %113, %110 : vector<4x1xf32>
    %115 = arith.addf %111, %114 : vector<4x1xf32>
    %116 = vector.shape_cast %115 : vector<4x1xf32> to vector<1x4x1xf32>
    %cst_50 = arith.constant dense<0.000000e+00> : vector<1xf32>
    %117 = vector.multi_reduction <add>, %116, %cst_50 [1, 2] : vector<1x4x1xf32> to vector<1xf32>
    %118 = vector.shape_cast %117 : vector<1xf32> to vector<1x1x1xf32>
    %119 = vector.extract %118[0, 0, 0] : f32 from vector<1x1x1xf32>
    %cst_51 = arith.constant 4.000000e+00 : f32
    %120 = arith.divf %119, %cst_51 : f32
    %cst_52 = arith.constant 0.000000e+00 : f32
    %121 = arith.subf %cst_52, %120 : f32
    %122 = arith.mulf %64, %64 : vector<4x16x2xf32>
    %cst_53 = arith.constant dense<0.000000e+00> : vector<4x16xf32>
    %123 = vector.multi_reduction <add>, %122, %cst_53 [2] : vector<4x16x2xf32> to vector<4x16xf32>
    %124 = math.sqrt %123 : vector<4x16xf32>
    %125 = vector.shape_cast %64 : vector<4x16x2xf32> to vector<4x1x16x2xf32>
    %126 = vector.shape_cast %64 : vector<4x16x2xf32> to vector<1x4x16x2xf32>
    %127 = vector.broadcast %125 : vector<4x1x16x2xf32> to vector<4x4x16x2xf32>
    %128 = vector.broadcast %126 : vector<1x4x16x2xf32> to vector<4x4x16x2xf32>
    %129 = arith.mulf %127, %128 : vector<4x4x16x2xf32>
    %cst_54 = arith.constant dense<0.000000e+00> : vector<4x4x16xf32>
    %130 = vector.multi_reduction <add>, %129, %cst_54 [3] : vector<4x4x16x2xf32> to vector<4x4x16xf32>
    %131 = vector.shape_cast %124 : vector<4x16xf32> to vector<4x1x16xf32>
    %132 = vector.shape_cast %124 : vector<4x16xf32> to vector<1x4x16xf32>
    %133 = vector.broadcast %131 : vector<4x1x16xf32> to vector<4x4x16xf32>
    %134 = vector.broadcast %132 : vector<1x4x16xf32> to vector<4x4x16xf32>
    %135 = arith.mulf %133, %134 : vector<4x4x16xf32>
    %cst_55 = arith.constant 9.99999974E-5 : f32
    %136 = vector.broadcast %cst_55 : f32 to vector<4x4x16xf32>
    %137 = arith.addf %135, %136 : vector<4x4x16xf32>
    %138 = tpu.iota {dimensions = array<i32: 0>} : vector<4x4xi32>
    %139 = tpu.iota {dimensions = array<i32: 1>} : vector<4x4xi32>
    %140 = arith.cmpi ne, %138, %139 : vector<4x4xi32>
    %141 = arith.extui %140 : vector<4x4xi1> to vector<4x4xi32>
    %142 = arith.sitofp %141 : vector<4x4xi32> to vector<4x4xf32>
    %143 = arith.divf %130, %137 : vector<4x4x16xf32>
    %144 = vector.shape_cast %142 : vector<4x4xf32> to vector<4x4x1xf32>
    %145 = vector.broadcast %144 : vector<4x4x1xf32> to vector<4x4x16xf32>
    %146 = arith.mulf %143, %145 : vector<4x4x16xf32>
    %cst_56 = arith.constant 0.000000e+00 : f32
    %cst_57 = arith.constant 1.000000e+00 : f32
    %147 = vector.broadcast %cst_56 : f32 to vector<4x4x16xf32>
    %148 = arith.maximumf %147, %146 : vector<4x4x16xf32>
    %149 = vector.broadcast %cst_57 : f32 to vector<4x4x16xf32>
    %150 = arith.minimumf %149, %148 : vector<4x4x16xf32>
    %151 = vector.shape_cast %150 : vector<4x4x16xf32> to vector<1x4x4x16xf32>
    %cst_58 = arith.constant dense<0.000000e+00> : vector<1xf32>
    %152 = vector.multi_reduction <add>, %151, %cst_58 [1, 2, 3] : vector<1x4x4x16xf32> to vector<1xf32>
    %153 = vector.shape_cast %152 : vector<1xf32> to vector<1x1x1x1xf32>
    %154 = vector.extract %153[0, 0, 0, 0] : f32 from vector<1x1x1x1xf32>
    %cst_59 = arith.constant 2.560000e+02 : f32
    %155 = arith.divf %154, %cst_59 : f32
    %cst_60 = arith.constant 0.00999999977 : f32
    %156 = arith.mulf %cst_60, %155 : f32
    %157 = arith.addf %121, %156 : f32
    %158 = vector.broadcast %157 : f32 to vector<1x1xf32>
    %c0_61 = arith.constant 0 : index
    %c0_62 = arith.constant 0 : index
    %159 = vector.load %arg12[%c0_61, %c0_62] : memref<1x1xf32, #tpu.memory_space<vmem>>, vector<1x1xf32>
    tpu.vector_store %arg12[%c0_61, %c0_62], %158 {strides = array<i32>} : memref<1x1xf32, #tpu.memory_space<vmem>>, vector<1x1xf32>,
    return
  }
}

</mosaic_0001>

<llo_original>
// kernel: tile.23
$region0: #{tile.23}
  #allocation0 [shape = 's32[1]{0}', space=sflag, size = 0x4, scoped, tag = 'scoped memory for tile.23']
  %s0 = inlined_call_operand.vmem [shape: pred[8], index: 0, kind: input, shape index: {}]
  %s1 = inlined_call_operand.vmem [shape: pred[4,8], index: 1, kind: output, shape index: {}]
  // Predicated region
  $region2: #{tile.23} parent=0 // pred_check
    _
  $region3: #{tile.23} parent=0 // pred_check_branch
    %3 = sbr.rel (0) target = $region5
  $region4: #{tile.23} parent=0 // pred_region
    _
  $region5: #{tile.23} parent=0 // pred_fallthru
    _
  %v4 = vld [vmem:[%s0] ss:$0 sm:$0xff]
  %v6 = vshra.s32 %v4, 0
  %v7 = vand.u32 %v6, 255
  %v8 = vpack.c.b16 0, %v7
  %v9 = vpack.c.b8 0, %v8
  %s11 = ssub.s32 2, 1
  %12 = vst [vmem:[%s1] sm:%s11] %v9

// kernel: tile.28
$region0: #{tile.28}
  #allocation0 [shape = 's32[1]{0}', space=sflag, size = 0x4, scoped, tag = 'scoped memory for tile.28']
  %s0 = inlined_call_operand.vmem [shape: pred[16], index: 0, kind: input, shape index: {}]
  %s1 = inlined_call_operand.vmem [shape: pred[4,16], index: 1, kind: output, shape index: {}]
  // Predicated region
  $region2: #{tile.28} parent=0 // pred_check
    _
  $region3: #{tile.28} parent=0 // pred_check_branch
    %3 = sbr.rel (0) target = $region5
  $region4: #{tile.28} parent=0 // pred_region
    _
  $region5: #{tile.28} parent=0 // pred_fallthru
    _
  %v4 = vld [vmem:[%s0] ss:$0 sm:$0xff]
  %v6 = vshra.s32 %v4, 0
  %v7 = vand.u32 %v6, 255
  %v8 = vpack.c.b16 0, %v7
  %v9 = vpack.c.b8 0, %v8
  %s11 = ssub.s32 2, 1
  %12 = vst [vmem:[%s1] sm:%s11] %v9

// kernel: modeler_forward.1
$region0: #{modeler_forward.1}
  #allocation0 [shape = 'u32[]', space=smem, size = 0x4, offset = 0x4, fixed_abs, tag = 'smem constant byte address 0x4 - core index']
  #allocation1 [shape = 'u32[72,128]{1,0:T(1,128)}', space=vmem, size = 0x9000, scoped, tag = 'internal scratch']
  %s0 = inlined_call_operand.vmem [shape: f32[96,30], index: 0, kind: input, shape index: {}]
  %s1 = inlined_call_operand.vmem [shape: f32[4,8,1], index: 1, kind: input, shape index: {}]
  %s2 = inlined_call_operand.vmem [shape: f32[4,16,1], index: 2, kind: input, shape index: {}]
  %s3 = inlined_call_operand.vmem [shape: f32[96,1], index: 3, kind: input, shape index: {}]
  %s4 = inlined_call_operand.vmem [shape: f32[96,1], index: 4, kind: input, shape index: {}]
  %s5 = inlined_call_operand.vmem [shape: f32[4,1], index: 5, kind: input, shape index: {}]
  %s6 = inlined_call_operand.vmem [shape: f32[90,100], index: 6, kind: input, shape index: {}]
  %s7 = inlined_call_operand.vmem [shape: f32[1,100], index: 7, kind: input, shape index: {}]
  %s8 = inlined_call_operand.vmem [shape: f32[300,50], index: 8, kind: input, shape index: {}]
  %s9 = inlined_call_operand.vmem [shape: f32[1,50], index: 9, kind: input, shape index: {}]
  %s10 = inlined_call_operand.vmem [shape: f32[50,3], index: 10, kind: input, shape index: {}]
  %s11 = inlined_call_operand.vmem [shape: f32[1,3], index: 11, kind: input, shape index: {}]
  %s12 = inlined_call_operand.hbm [shape: f32[1,1], index: 12, kind: output, shape index: {}]
  %s13 = sld [smem:[#allocation0]]
  $region58: #{modeler_forward.1} parent=0
    _
  %s15 = ssub.s32 1, %s13
  %s16 = scalar_select 0, %s15, %s13
  $region1: #{modeler_forward.1} parent=0
    #allocation2 [shape = 'u8[512]{0}', space=vmem, size = 0x400, scoped, tag = 'output window, operand 0, single buffered']
    #allocation3 [shape = 's32[1]{0}', space=sflag, size = 0x4, scoped, tag = 'scoped memory for modeler_forward.1']
    %17 = vsyncpa [#allocation3], 0
    // Predicated region
    $region2: #{modeler_forward.1} parent=1 // pred_check
      _
    $region3: #{modeler_forward.1} parent=1 // pred_check_branch
      %19 = sbr.rel (0) target = $region5
    $region4: #{modeler_forward.1} parent=1 // pred_region
      _
    $region5: #{modeler_forward.1} parent=1 // pred_fallthru
      _
    // Predicated region
    $region6: #{modeler_forward.1} parent=1 // pred_check
      _
    $region7: #{modeler_forward.1} parent=1 // pred_check_branch
      %21 = sbr.rel (0) target = $region9
    $region8: #{modeler_forward.1} parent=1 // pred_region
      _
    $region9: #{modeler_forward.1} parent=1 // pred_fallthru
      _
    // Predicated region
    $region10: #{modeler_forward.1} parent=1 // pred_check
      _
    $region11: #{modeler_forward.1} parent=1 // pred_check_branch
      %23 = sbr.rel (0) target = $region13
    $region12: #{modeler_forward.1} parent=1 // pred_region
      _
    $region13: #{modeler_forward.1} parent=1 // pred_fallthru
      _
    // Predicated region
    $region14: #{modeler_forward.1} parent=1 // pred_check
      _
    $region15: #{modeler_forward.1} parent=1 // pred_check_branch
      %25 = sbr.rel (0) target = $region17
    $region16: #{modeler_forward.1} parent=1 // pred_region
      _
    $region17: #{modeler_forward.1} parent=1 // pred_fallthru
      _
    // Predicated region
    $region18: #{modeler_forward.1} parent=1 // pred_check
      _
    $region19: #{modeler_forward.1} parent=1 // pred_check_branch
      %27 = sbr.rel (0) target = $region21
    $region20: #{modeler_forward.1} parent=1 // pred_region
      _
    $region21: #{modeler_forward.1} parent=1 // pred_fallthru
      _
    // Predicated region
    $region22: #{modeler_forward.1} parent=1 // pred_check
      _
    $region23: #{modeler_forward.1} parent=1 // pred_check_branch
      %29 = sbr.rel (0) target = $region25
    $region24: #{modeler_forward.1} parent=1 // pred_region
      _
    $region25: #{modeler_forward.1} parent=1 // pred_fallthru
      _
    // Predicated region
    $region26: #{modeler_forward.1} parent=1 // pred_check
      _
    $region27: #{modeler_forward.1} parent=1 // pred_check_branch
      %31 = sbr.rel (0) target = $region29
    $region28: #{modeler_forward.1} parent=1 // pred_region
      _
    $region29: #{modeler_forward.1} parent=1 // pred_fallthru
      _
    // Predicated region
    $region30: #{modeler_forward.1} parent=1 // pred_check
      _
    $region31: #{modeler_forward.1} parent=1 // pred_check_branch
      %33 = sbr.rel (0) target = $region33
    $region32: #{modeler_forward.1} parent=1 // pred_region
      _
    $region33: #{modeler_forward.1} parent=1 // pred_fallthru
      _
    // Predicated region
    $region34: #{modeler_forward.1} parent=1 // pred_check
      _
    $region35: #{modeler_forward.1} parent=1 // pred_check_branch
      %35 = sbr.rel (0) target = $region37
    $region36: #{modeler_forward.1} parent=1 // pred_region
      _
    $region37: #{modeler_forward.1} parent=1 // pred_fallthru
      _
    // Predicated region
    $region38: #{modeler_forward.1} parent=1 // pred_check
      _
    $region39: #{modeler_forward.1} parent=1 // pred_check_branch
      %37 = sbr.rel (0) target = $region41
    $region40: #{modeler_forward.1} parent=1 // pred_region
      _
    $region41: #{modeler_forward.1} parent=1 // pred_fallthru
      _
    // Predicated region
    $region42: #{modeler_forward.1} parent=1 // pred_check
      _
    $region43: #{modeler_forward.1} parent=1 // pred_check_branch
      %39 = sbr.rel (0) target = $region45
    $region44: #{modeler_forward.1} parent=1 // pred_region
      _
    $region45: #{modeler_forward.1} parent=1 // pred_fallthru
      _
    // Predicated region
    $region46: #{modeler_forward.1} parent=1 // pred_check
      _
    $region47: #{modeler_forward.1} parent=1 // pred_check_branch
      %41 = sbr.rel (0) target = $region49
    $region48: #{modeler_forward.1} parent=1 // pred_region
      _
    $region49: #{modeler_forward.1} parent=1 // pred_fallthru
      _
    %v42 = vld [vmem:[%s0] sm:$0xff]
    %v43 = vld [vmem:[%s0 + $0x8] sm:$0xff]
    %v44 = vld [vmem:[%s0 + $0x10] sm:$0xff]
    %v45 = vld [vmem:[%s0 + $0x18] sm:$0xff]
    %v46 = vld [vmem:[%s0 + $0x20] sm:$0xff]
    %v47 = vld [vmem:[%s0 + $0x28] sm:$0xff]
    %v48 = vld [vmem:[%s0 + $0x30] sm:$0xff]
    %v49 = vld [vmem:[%s0 + $0x38] sm:$0xff]
    %v50 = vld [vmem:[%s0 + $0x40] sm:$0xff]
    %v51 = vld [vmem:[%s0 + $0x48] sm:$0xff]
    %v52 = vld [vmem:[%s0 + $0x50] sm:$0xff]
    %v53 = vld [vmem:[%s0 + $0x58] sm:$0xff]
    %v54 = vld [vmem:[%s3] sm:$0xff]
    %v55 = vld [vmem:[%s3 + $0x8] sm:$0xff]
    %v56 = vld [vmem:[%s3 + $0x10] sm:$0xff]
    %v57 = vld [vmem:[%s3 + $0x18] sm:$0xff]
    %v58 = vld [vmem:[%s3 + $0x20] sm:$0xff]
    %v59 = vld [vmem:[%s3 + $0x28] sm:$0xff]
    %v60 = vld [vmem:[%s3 + $0x30] sm:$0xff]
    %v61 = vld [vmem:[%s3 + $0x38] sm:$0xff]
    %v62 = vld [vmem:[%s3 + $0x40] sm:$0xff]
    %v63 = vld [vmem:[%s3 + $0x48] sm:$0xff]
    %v64 = vld [vmem:[%s3 + $0x50] sm:$0xff]
    %v65 = vld [vmem:[%s3 + $0x58] sm:$0xff]
    %v66 = vld [vmem:[%s4] sm:$0xff]
    %v67 = vld [vmem:[%s4 + $0x8] sm:$0xff]
    %v68 = vld [vmem:[%s4 + $0x10] sm:$0xff]
    %v69 = vld [vmem:[%s4 + $0x18] sm:$0xff]
    %v70 = vld [vmem:[%s4 + $0x20] sm:$0xff]
    %v71 = vld [vmem:[%s4 + $0x28] sm:$0xff]
    %v72 = vld [vmem:[%s4 + $0x30] sm:$0xff]
    %v73 = vld [vmem:[%s4 + $0x38] sm:$0xff]
    %v74 = vld [vmem:[%s4 + $0x40] sm:$0xff]
    %v75 = vld [vmem:[%s4 + $0x48] sm:$0xff]
    %v76 = vld [vmem:[%s4 + $0x50] sm:$0xff]
    %v77 = vld [vmem:[%s4 + $0x58] sm:$0xff]
    %v78 = vld [vmem:[%s6] sm:$0xff]
    %v79 = vld [vmem:[%s6 + $0x8] sm:$0xff]
    %v80 = vld [vmem:[%s6 + $0x10] sm:$0xff]
    %v81 = vld [vmem:[%s6 + $0x18] sm:$0xff]
    %v82 = vld [vmem:[%s6 + $0x20] sm:$0xff]
    %v83 = vld [vmem:[%s6 + $0x28] sm:$0xff]
    %v84 = vld [vmem:[%s6 + $0x30] sm:$0xff]
    %v85 = vld [vmem:[%s6 + $0x38] sm:$0xff]
    %v86 = vld [vmem:[%s6 + $0x40] sm:$0xff]
    %v87 = vld [vmem:[%s6 + $0x48] sm:$0xff]
    %v88 = vld [vmem:[%s6 + $0x50] sm:$0xff]
    %v89 = vld [vmem:[%s6 + $0x58] sm:$0x3]
    %v90 = vld [vmem:[%s7] sm:$0x1]
    %v91 = vrot.slane %v42, 7
    %v92 = vrot.slane %v43, 7
    %v93 = vrot.slane %v44, 7
    %v94 = vrot.slane %v45, 7
    %v95 = vrot.slane %v46, 7
    %v96 = vrot.slane %v47, 7
    %v97 = vrot.slane %v48, 7
    %v98 = vrot.slane %v49, 7
    %v99 = vrot.slane %v50, 7
    %v100 = vrot.slane %v51, 7
    %v101 = vrot.slane %v52, 7
    %v102 = vrot.slane %v53, 7
    %v103 = vlaneseq
    %v104 = vshrl.u32 %v103, 7
    %vm105 = vcmp.lt.s32.totalorder %v104, 1
    %v106 = vsel %vm105, %v101, %v102
    %v107 = vsel %vm105, %v100, %v101
    %v108 = vsel %vm105, %v99, %v100
    %v109 = vsel %vm105, %v98, %v99
    %v110 = vsel %vm105, %v97, %v98
    %v111 = vsel %vm105, %v96, %v97
    %v112 = vsel %vm105, %v95, %v96
    %v113 = vsel %vm105, %v94, %v95
    %v114 = vsel %vm105, %v93, %v94
    %v115 = vsel %vm105, %v92, %v93
    %v116 = vsel %vm105, %v91, %v92
    %v117 = vsel %vm105, %v102, %v91
    %119 = vset.pattern.permute.xlu0 0
    %120 = vperm.xlu0 %119, %v54
    %v121 = vpop.permute.xlu0 %120
    %124 = vset.pattern.permute.xlu0 0
    %125 = vperm.xlu0 %124, %v55
    %v126 = vpop.permute.xlu0 %125
    %129 = vset.pattern.permute.xlu0 0
    %130 = vperm.xlu0 %129, %v56
    %v131 = vpop.permute.xlu0 %130
    %134 = vset.pattern.permute.xlu0 0
    %135 = vperm.xlu0 %134, %v57
    %v136 = vpop.permute.xlu0 %135
    %139 = vset.pattern.permute.xlu0 0
    %140 = vperm.xlu0 %139, %v58
    %v141 = vpop.permute.xlu0 %140
    %144 = vset.pattern.permute.xlu0 0
    %145 = vperm.xlu0 %144, %v59
    %v146 = vpop.permute.xlu0 %145
    %149 = vset.pattern.permute.xlu0 0
    %150 = vperm.xlu0 %149, %v60
    %v151 = vpop.permute.xlu0 %150
    %154 = vset.pattern.permute.xlu0 0
    %155 = vperm.xlu0 %154, %v61
    %v156 = vpop.permute.xlu0 %155
    %159 = vset.pattern.permute.xlu0 0
    %160 = vperm.xlu0 %159, %v62
    %v161 = vpop.permute.xlu0 %160
    %164 = vset.pattern.permute.xlu0 0
    %165 = vperm.xlu0 %164, %v63
    %v166 = vpop.permute.xlu0 %165
    %169 = vset.pattern.permute.xlu0 0
    %170 = vperm.xlu0 %169, %v64
    %v171 = vpop.permute.xlu0 %170
    %174 = vset.pattern.permute.xlu0 0
    %175 = vperm.xlu0 %174, %v65
    %v176 = vpop.permute.xlu0 %175
    %v178 = vmul.f32 %v117, %v121
    %v179 = vmul.f32 %v116, %v126
    %v180 = vmul.f32 %v115, %v131
    %v181 = vmul.f32 %v114, %v136
    %v182 = vmul.f32 %v113, %v141
    %v183 = vmul.f32 %v112, %v146
    %v184 = vmul.f32 %v111, %v151
    %v185 = vmul.f32 %v110, %v156
    %v186 = vmul.f32 %v109, %v161
    %v187 = vmul.f32 %v108, %v166
    %v188 = vmul.f32 %v107, %v171
    %v189 = vmul.f32 %v106, %v176
    %v190 = vrot.slane %v42, 1
    %v191 = vrot.slane %v43, 1
    %v192 = vrot.slane %v44, 1
    %v193 = vrot.slane %v45, 1
    %v194 = vrot.slane %v46, 1
    %v195 = vrot.slane %v47, 1
    %v196 = vrot.slane %v48, 1
    %v197 = vrot.slane %v49, 1
    %v198 = vrot.slane %v50, 1
    %v199 = vrot.slane %v51, 1
    %v200 = vrot.slane %v52, 1
    %v201 = vrot.slane %v53, 1
    %vm202 = vcmp.lt.s32.totalorder %v104, 7
    %v203 = vsel %vm202, %v200, %v201
    %v204 = vsel %vm202, %v199, %v200
    %v205 = vsel %vm202, %v198, %v199
    %v206 = vsel %vm202, %v197, %v198
    %v207 = vsel %vm202, %v196, %v197
    %v208 = vsel %vm202, %v195, %v196
    %v209 = vsel %vm202, %v194, %v195
    %v210 = vsel %vm202, %v193, %v194
    %v211 = vsel %vm202, %v192, %v193
    %v212 = vsel %vm202, %v191, %v192
    %v213 = vsel %vm202, %v190, %v191
    %v214 = vsel %vm202, %v201, %v190
    %216 = vset.pattern.permute.xlu0 0
    %217 = vperm.xlu0 %216, %v66
    %v218 = vpop.permute.xlu0 %217
    %221 = vset.pattern.permute.xlu0 0
    %222 = vperm.xlu0 %221, %v67
    %v223 = vpop.permute.xlu0 %222
    %226 = vset.pattern.permute.xlu0 0
    %227 = vperm.xlu0 %226, %v68
    %v228 = vpop.permute.xlu0 %227
    %231 = vset.pattern.permute.xlu0 0
    %232 = vperm.xlu0 %231, %v69
    %v233 = vpop.permute.xlu0 %232
    %236 = vset.pattern.permute.xlu0 0
    %237 = vperm.xlu0 %236, %v70
    %v238 = vpop.permute.xlu0 %237
    %241 = vset.pattern.permute.xlu0 0
    %242 = vperm.xlu0 %241, %v71
    %v243 = vpop.permute.xlu0 %242
    %246 = vset.pattern.permute.xlu0 0
    %247 = vperm.xlu0 %246, %v72
    %v248 = vpop.permute.xlu0 %247
    %251 = vset.pattern.permute.xlu0 0
    %252 = vperm.xlu0 %251, %v73
    %v253 = vpop.permute.xlu0 %252
    %256 = vset.pattern.permute.xlu0 0
    %257 = vperm.xlu0 %256, %v74
    %v258 = vpop.permute.xlu0 %257
    %261 = vset.pattern.permute.xlu0 0
    %262 = vperm.xlu0 %261, %v75
    %v263 = vpop.permute.xlu0 %262
    %266 = vset.pattern.permute.xlu0 0
    %267 = vperm.xlu0 %266, %v76
    %v268 = vpop.permute.xlu0 %267
    %271 = vset.pattern.permute.xlu0 0
    %272 = vperm.xlu0 %271, %v77
    %v273 = vpop.permute.xlu0 %272
    %v275 = vmul.f32 %v213, %v218
    %v276 = vmul.f32 %v212, %v223
    %v277 = vmul.f32 %v211, %v228
    %v278 = vmul.f32 %v210, %v233
    %v279 = vmul.f32 %v209, %v238
    %v280 = vmul.f32 %v208, %v243
    %v281 = vmul.f32 %v207, %v248
    %v282 = vmul.f32 %v206, %v253
    %v283 = vmul.f32 %v205, %v258
    %v284 = vmul.f32 %v204, %v263
    %v285 = vmul.f32 %v203, %v268
    %v286 = vmul.f32 %v214, %v273
    %299 = vrot.lane.b32.xlu0 %v42, 30
    %v300 = vpop.permute.xlu0 %299
    %301 = vrot.lane.b32.xlu0 %v43, 30
    %v302 = vpop.permute.xlu0 %301
    %303 = vrot.lane.b32.xlu0 %v44, 30
    %v304 = vpop.permute.xlu0 %303
    %305 = vrot.lane.b32.xlu0 %v45, 30
    %v306 = vpop.permute.xlu0 %305
    %307 = vrot.lane.b32.xlu0 %v46, 30
    %v308 = vpop.permute.xlu0 %307
    %309 = vrot.lane.b32.xlu0 %v47, 30
    %v310 = vpop.permute.xlu0 %309
    %311 = vrot.lane.b32.xlu0 %v48, 30
    %v312 = vpop.permute.xlu0 %311
    %313 = vrot.lane.b32.xlu0 %v49, 30
    %v314 = vpop.permute.xlu0 %313
    %315 = vrot.lane.b32.xlu0 %v50, 30
    %v316 = vpop.permute.xlu0 %315
    %317 = vrot.lane.b32.xlu0 %v51, 30
    %v318 = vpop.permute.xlu0 %317
    %319 = vrot.lane.b32.xlu0 %v52, 30
    %v320 = vpop.permute.xlu0 %319
    %321 = vrot.lane.b32.xlu0 %v53, 30
    %v322 = vpop.permute.xlu0 %321
    %347 = vrot.lane.b32.xlu0 %v275, 60
    %v348 = vpop.permute.xlu0 %347
    %349 = vrot.lane.b32.xlu0 %v276, 60
    %v350 = vpop.permute.xlu0 %349
    %351 = vrot.lane.b32.xlu0 %v277, 60
    %v352 = vpop.permute.xlu0 %351
    %353 = vrot.lane.b32.xlu0 %v278, 60
    %v354 = vpop.permute.xlu0 %353
    %355 = vrot.lane.b32.xlu0 %v279, 60
    %v356 = vpop.permute.xlu0 %355
    %357 = vrot.lane.b32.xlu0 %v280, 60
    %v358 = vpop.permute.xlu0 %357
    %359 = vrot.lane.b32.xlu0 %v281, 60
    %v360 = vpop.permute.xlu0 %359
    %361 = vrot.lane.b32.xlu0 %v282, 60
    %v362 = vpop.permute.xlu0 %361
    %363 = vrot.lane.b32.xlu0 %v283, 60
    %v364 = vpop.permute.xlu0 %363
    %365 = vrot.lane.b32.xlu0 %v284, 60
    %v366 = vpop.permute.xlu0 %365
    %367 = vrot.lane.b32.xlu0 %v285, 60
    %v368 = vpop.permute.xlu0 %367
    %369 = vrot.lane.b32.xlu0 %v286, 60
    %v370 = vpop.permute.xlu0 %369
    %vm383 = vcmask 244736
    %v384 = vsel %vm383, %v178, %v300
    %v385 = vsel %vm383, %v179, %v302
    %v386 = vsel %vm383, %v180, %v304
    %v387 = vsel %vm383, %v181, %v306
    %v388 = vsel %vm383, %v182, %v308
    %v389 = vsel %vm383, %v183, %v310
    %v390 = vsel %vm383, %v184, %v312
    %v391 = vsel %vm383, %v185, %v314
    %v392 = vsel %vm383, %v186, %v316
    %v393 = vsel %vm383, %v187, %v318
    %v394 = vsel %vm383, %v188, %v320
    %v395 = vsel %vm383, %v189, %v322
    %vm396 = vcmask 490496
    %v397 = vsel %vm396, %v384, %v348
    %v398 = vsel %vm396, %v385, %v350
    %v399 = vsel %vm396, %v386, %v352
    %v400 = vsel %vm396, %v387, %v354
    %v401 = vsel %vm396, %v388, %v356
    %v402 = vsel %vm396, %v389, %v358
    %v403 = vsel %vm396, %v390, %v360
    %v404 = vsel %vm396, %v391, %v362
    %v405 = vsel %vm396, %v392, %v364
    %v406 = vsel %vm396, %v393, %v366
    %v407 = vsel %vm396, %v394, %v368
    %v408 = vsel %vm396, %v395, %v370
    %v410 = vperm.slane %v90, 0
    %vm412 = vcmask 736256
    %v414 = vsel %vm412, %v397, 0
    %v417 = vsel %vm412, %v398, 0
    %v420 = vsel %vm412, %v399, 0
    %v423 = vsel %vm412, %v400, 0
    %v426 = vsel %vm412, %v401, 0
    %v429 = vsel %vm412, %v402, 0
    %v432 = vsel %vm412, %v403, 0
    %v435 = vsel %vm412, %v404, 0
    %v438 = vsel %vm412, %v405, 0
    %v441 = vsel %vm412, %v406, 0
    %v444 = vsel %vm412, %v407, 0
    %v447 = vsel %vm412, %v408, 0
    %vm449 = vcmask 1041408
    %v451 = vsel %vm449, %v89, 0
    %453 = vmatpush.msra.mxu0 0.0
    %454 = vmatpush.msra.mxu0 0.0
    %455 = vmatpush.msra.mxu0 0.0
    %456 = vmatpush.msra.mxu0 0.0
    %457 = vmatpush.msra.mxu0 %v451
    %458 = vmatpush.msra.mxu0 %v88
    %459 = vmatpush.msra.mxu0 %v87
    %460 = vmatpush.msra.mxu0 %v86
    %461 = vmatpush.msra.mxu0 %v85
    %462 = vmatpush.msra.mxu0 %v84
    %463 = vmatpush.msra.mxu0 %v83
    %464 = vmatpush.msra.mxu0 %v82
    %465 = vmatpush.msra.mxu0 %v81
    %466 = vmatpush.msra.mxu0 %v80
    %467 = vmatpush.msra.mxu0 %v79
    %468 = vmatpush.msra.mxu0 %v78
    %469 = vmatmul.f32.gmra.mxu0 %v414
    %v470 = vpop.f32.mrf.mxu0
    %v471 = vadd.f32 %v410, %v470
    %472 = vmatmul.f32.gmra.mxu0 %v417
    %v473 = vpop.f32.mrf.mxu0
    %v474 = vadd.f32 %v410, %v473
    %475 = vmatmul.f32.gmra.mxu0 %v420
    %v476 = vpop.f32.mrf.mxu0
    %v477 = vadd.f32 %v410, %v476
    %478 = vmatmul.f32.gmra.mxu0 %v423
    %v479 = vpop.f32.mrf.mxu0
    %v480 = vadd.f32 %v410, %v479
    %481 = vmatmul.f32.gmra.mxu0 %v426
    %v482 = vpop.f32.mrf.mxu0
    %v483 = vadd.f32 %v410, %v482
    %484 = vmatmul.f32.gmra.mxu0 %v429
    %v485 = vpop.f32.mrf.mxu0
    %v486 = vadd.f32 %v410, %v485
    %487 = vmatmul.f32.gmra.mxu0 %v432
    %v488 = vpop.f32.mrf.mxu0
    %v489 = vadd.f32 %v410, %v488
    %490 = vmatmul.f32.gmra.mxu0 %v435
    %v491 = vpop.f32.mrf.mxu0
    %v492 = vadd.f32 %v410, %v491
    %493 = vmatmul.f32.gmra.mxu0 %v438
    %v494 = vpop.f32.mrf.mxu0
    %v495 = vadd.f32 %v410, %v494
    %496 = vmatmul.f32.gmra.mxu0 %v441
    %v497 = vpop.f32.mrf.mxu0
    %v498 = vadd.f32 %v410, %v497
    %499 = vmatmul.f32.gmra.mxu0 %v444
    %v500 = vpop.f32.mrf.mxu0
    %v501 = vadd.f32 %v410, %v500
    %502 = vmatmul.f32.gmra.mxu0 %v447
    %v503 = vpop.f32.mrf.mxu0
    %v504 = vadd.f32 %v410, %v503
    %505 = vdwg.mxu0
    %v506 = vtanh.pop %v471
    %v507 = vtanh.pop %v474
    %v508 = vtanh.pop %v477
    %v509 = vtanh.pop %v480
    %v510 = vtanh.pop %v483
    %v511 = vtanh.pop %v486
    %v512 = vtanh.pop %v489
    %v513 = vtanh.pop %v492
    %v514 = vtanh.pop %v495
    %v515 = vtanh.pop %v498
    %v516 = vtanh.pop %v501
    %v517 = vtanh.pop %v504
    %v518 = vld [vmem:[%s8] sm:$0xff]
    %v519 = vld [vmem:[%s8 + $0x8] sm:$0xff]
    %v520 = vld [vmem:[%s8 + $0x10] sm:$0xff]
    %v521 = vld [vmem:[%s8 + $0x18] sm:$0xff]
    %v522 = vld [vmem:[%s8 + $0x20] sm:$0xff]
    %v523 = vld [vmem:[%s8 + $0x28] sm:$0xff]
    %v524 = vld [vmem:[%s8 + $0x30] sm:$0xff]
    %v525 = vld [vmem:[%s8 + $0x38] sm:$0xff]
    %v526 = vld [vmem:[%s8 + $0x40] sm:$0xff]
    %v527 = vld [vmem:[%s8 + $0x48] sm:$0xff]
    %v528 = vld [vmem:[%s8 + $0x50] sm:$0xff]
    %v529 = vld [vmem:[%s8 + $0x58] sm:$0xff]
    %v530 = vld [vmem:[%s8 + $0x60] sm:$0xff]
    %v531 = vld [vmem:[%s8 + $0x68] sm:$0xff]
    %v532 = vld [vmem:[%s8 + $0x70] sm:$0xff]
    %v533 = vld [vmem:[%s8 + $0x78] sm:$0xff]
    %v534 = vld [vmem:[%s8 + $0x80] sm:$0xff]
    %v535 = vld [vmem:[%s8 + $0x88] sm:$0xff]
    %v536 = vld [vmem:[%s8 + $0x90] sm:$0xff]
    %v537 = vld [vmem:[%s8 + $0x98] sm:$0xff]
    %v538 = vld [vmem:[%s8 + $0xa0] sm:$0xff]
    %v539 = vld [vmem:[%s8 + $0xa8] sm:$0xff]
    %v540 = vld [vmem:[%s8 + $0xb0] sm:$0xff]
    %v541 = vld [vmem:[%s8 + $0xb8] sm:$0xff]
    %v542 = vld [vmem:[%s8 + $0xc0] sm:$0xff]
    %v543 = vld [vmem:[%s8 + $0xc8] sm:$0xff]
    %v544 = vld [vmem:[%s8 + $0xd0] sm:$0xff]
    %v545 = vld [vmem:[%s8 + $0xd8] sm:$0xff]
    %v546 = vld [vmem:[%s8 + $0xe0] sm:$0xff]
    %v547 = vld [vmem:[%s8 + $0xe8] sm:$0xff]
    %v548 = vld [vmem:[%s8 + $0xf0] sm:$0xff]
    %v549 = vld [vmem:[%s8 + $0xf8] sm:$0xff]
    %v550 = vld [vmem:[%s8 + $0x100] sm:$0xff]
    %v551 = vld [vmem:[%s8 + $0x108] sm:$0xff]
    %v552 = vld [vmem:[%s8 + $0x110] sm:$0xff]
    %v553 = vld [vmem:[%s8 + $0x118] sm:$0xff]
    %v554 = vld [vmem:[%s8 + $0x120] sm:$0xff]
    %v555 = vld [vmem:[%s8 + $0x128] sm:$0xf]
    %v556 = vld [vmem:[%s9] sm:$0x1]
    %v557 = vrot.slane %v506, 7
    %v558 = vrot.slane %v507, 7
    %v559 = vrot.slane %v508, 7
    %v560 = vrot.slane %v509, 7
    %v561 = vrot.slane %v510, 7
    %v562 = vrot.slane %v511, 7
    %v563 = vrot.slane %v512, 7
    %v564 = vrot.slane %v513, 7
    %v565 = vrot.slane %v514, 7
    %v566 = vrot.slane %v515, 7
    %v567 = vrot.slane %v516, 7
    %v568 = vrot.slane %v517, 7
    %v569 = vsel %vm105, %v567, %v568
    %v570 = vsel %vm105, %v566, %v567
    %v571 = vsel %vm105, %v565, %v566
    %v572 = vsel %vm105, %v564, %v565
    %v573 = vsel %vm105, %v563, %v564
    %v574 = vsel %vm105, %v562, %v563
    %v575 = vsel %vm105, %v561, %v562
    %v576 = vsel %vm105, %v560, %v561
    %v577 = vsel %vm105, %v559, %v560
    %v578 = vsel %vm105, %v558, %v559
    %v579 = vsel %vm105, %v557, %v558
    %v580 = vsel %vm105, %v568, %v557
    %v581 = vmul.f32 %v580, %v121
    %v582 = vmul.f32 %v579, %v126
    %v583 = vmul.f32 %v578, %v131
    %v584 = vmul.f32 %v577, %v136
    %v585 = vmul.f32 %v576, %v141
    %v586 = vmul.f32 %v575, %v146
    %v587 = vmul.f32 %v574, %v151
    %v588 = vmul.f32 %v573, %v156
    %v589 = vmul.f32 %v572, %v161
    %v590 = vmul.f32 %v571, %v166
    %v591 = vmul.f32 %v570, %v171
    %v592 = vmul.f32 %v569, %v176
    %v593 = vrot.slane %v506, 1
    %v594 = vrot.slane %v507, 1
    %v595 = vrot.slane %v508, 1
    %v596 = vrot.slane %v509, 1
    %v597 = vrot.slane %v510, 1
    %v598 = vrot.slane %v511, 1
    %v599 = vrot.slane %v512, 1
    %v600 = vrot.slane %v513, 1
    %v601 = vrot.slane %v514, 1
    %v602 = vrot.slane %v515, 1
    %v603 = vrot.slane %v516, 1
    %v604 = vrot.slane %v517, 1
    %v605 = vsel %vm202, %v603, %v604
    %v606 = vsel %vm202, %v602, %v603
    %v607 = vsel %vm202, %v601, %v602
    %v608 = vsel %vm202, %v600, %v601
    %v609 = vsel %vm202, %v599, %v600
    %v610 = vsel %vm202, %v598, %v599
    %v611 = vsel %vm202, %v597, %v598
    %v612 = vsel %vm202, %v596, %v597
    %v613 = vsel %vm202, %v595, %v596
    %v614 = vsel %vm202, %v594, %v595
    %v615 = vsel %vm202, %v593, %v594
    %v616 = vsel %vm202, %v604, %v593
    %v617 = vmul.f32 %v615, %v218
    %v618 = vmul.f32 %v614, %v223
    %v619 = vmul.f32 %v613, %v228
    %v620 = vmul.f32 %v612, %v233
    %v621 = vmul.f32 %v611, %v238
    %v622 = vmul.f32 %v610, %v243
    %v623 = vmul.f32 %v609, %v248
    %v624 = vmul.f32 %v608, %v253
    %v625 = vmul.f32 %v607, %v258
    %v626 = vmul.f32 %v606, %v263
    %v627 = vmul.f32 %v605, %v268
    %v628 = vmul.f32 %v616, %v273
    %641 = vrot.lane.b32.xlu0 %v506, 100
    %v642 = vpop.permute.xlu0 %641
    %643 = vrot.lane.b32.xlu0 %v507, 100
    %v644 = vpop.permute.xlu0 %643
    %645 = vrot.lane.b32.xlu0 %v508, 100
    %v646 = vpop.permute.xlu0 %645
    %647 = vrot.lane.b32.xlu0 %v509, 100
    %v648 = vpop.permute.xlu0 %647
    %649 = vrot.lane.b32.xlu0 %v510, 100
    %v650 = vpop.permute.xlu0 %649
    %651 = vrot.lane.b32.xlu0 %v511, 100
    %v652 = vpop.permute.xlu0 %651
    %653 = vrot.lane.b32.xlu0 %v512, 100
    %v654 = vpop.permute.xlu0 %653
    %655 = vrot.lane.b32.xlu0 %v513, 100
    %v656 = vpop.permute.xlu0 %655
    %657 = vrot.lane.b32.xlu0 %v514, 100
    %v658 = vpop.permute.xlu0 %657
    %659 = vrot.lane.b32.xlu0 %v515, 100
    %v660 = vpop.permute.xlu0 %659
    %661 = vrot.lane.b32.xlu0 %v516, 100
    %v662 = vpop.permute.xlu0 %661
    %663 = vrot.lane.b32.xlu0 %v517, 100
    %v664 = vpop.permute.xlu0 %663
    %689 = vrot.lane.b32.xlu0 %v617, 72
    %v690 = vpop.permute.xlu0 %689
    %691 = vrot.lane.b32.xlu0 %v618, 72
    %v692 = vpop.permute.xlu0 %691
    %693 = vrot.lane.b32.xlu0 %v619, 72
    %v694 = vpop.permute.xlu0 %693
    %695 = vrot.lane.b32.xlu0 %v620, 72
    %v696 = vpop.permute.xlu0 %695
    %697 = vrot.lane.b32.xlu0 %v621, 72
    %v698 = vpop.permute.xlu0 %697
    %699 = vrot.lane.b32.xlu0 %v622, 72
    %v700 = vpop.permute.xlu0 %699
    %701 = vrot.lane.b32.xlu0 %v623, 72
    %v702 = vpop.permute.xlu0 %701
    %703 = vrot.lane.b32.xlu0 %v624, 72
    %v704 = vpop.permute.xlu0 %703
    %705 = vrot.lane.b32.xlu0 %v625, 72
    %v706 = vpop.permute.xlu0 %705
    %707 = vrot.lane.b32.xlu0 %v626, 72
    %v708 = vpop.permute.xlu0 %707
    %709 = vrot.lane.b32.xlu0 %v627, 72
    %v710 = vpop.permute.xlu0 %709
    %711 = vrot.lane.b32.xlu0 %v628, 72
    %v712 = vpop.permute.xlu0 %711
    %vm725 = vcmask 818176
    %v726 = vsel %vm725, %v581, %v642
    %v727 = vsel %vm725, %v582, %v644
    %v728 = vsel %vm725, %v583, %v646
    %v729 = vsel %vm725, %v584, %v648
    %v730 = vsel %vm725, %v585, %v650
    %v731 = vsel %vm725, %v586, %v652
    %v732 = vsel %vm725, %v587, %v654
    %v733 = vsel %vm725, %v588, %v656
    %v734 = vsel %vm725, %v589, %v658
    %v735 = vsel %vm725, %v590, %v660
    %v736 = vsel %vm725, %v591, %v662
    %v737 = vsel %vm725, %v592, %v664
    %vm738 = vcmask 588800
    %v739 = vsel %vm738, %v642, %v690
    %v740 = vsel %vm738, %v644, %v692
    %v741 = vsel %vm738, %v646, %v694
    %v742 = vsel %vm738, %v648, %v696
    %v743 = vsel %vm738, %v650, %v698
    %v744 = vsel %vm738, %v652, %v700
    %v745 = vsel %vm738, %v654, %v702
    %v746 = vsel %vm738, %v656, %v704
    %v747 = vsel %vm738, %v658, %v706
    %v748 = vsel %vm738, %v660, %v708
    %v749 = vsel %vm738, %v662, %v710
    %v750 = vsel %vm738, %v664, %v712
    %v752 = vperm.slane %v556, 0
    %vm754 = vcmask 359424
    %v755 = vsel %vm754, %v690, 0
    %v757 = vsel %vm754, %v692, 0
    %v759 = vsel %vm754, %v694, 0
    %v761 = vsel %vm754, %v696, 0
    %v763 = vsel %vm754, %v698, 0
    %v765 = vsel %vm754, %v700, 0
    %v767 = vsel %vm754, %v702, 0
    %v769 = vsel %vm754, %v704, 0
    %v771 = vsel %vm754, %v706, 0
    %v773 = vsel %vm754, %v708, 0
    %v775 = vsel %vm754, %v710, 0
    %v777 = vsel %vm754, %v712, 0
    %vm779 = vcmask 1043456
    %v781 = vsel %vm779, %v555, 0
    %783 = vmatpush.msra.mxu0 %v533
    %784 = vmatpush.msra.mxu0 %v532
    %785 = vmatpush.msra.mxu0 %v531
    %786 = vmatpush.msra.mxu0 %v530
    %787 = vmatpush.msra.mxu0 %v529
    %788 = vmatpush.msra.mxu0 %v528
    %789 = vmatpush.msra.mxu0 %v527
    %790 = vmatpush.msra.mxu0 %v526
    %791 = vmatpush.msra.mxu0 %v525
    %792 = vmatpush.msra.mxu0 %v524
    %793 = vmatpush.msra.mxu0 %v523
    %794 = vmatpush.msra.mxu0 %v522
    %795 = vmatpush.msra.mxu0 %v521
    %796 = vmatpush.msra.mxu0 %v520
    %797 = vmatpush.msra.mxu0 %v519
    %798 = vmatpush.msra.mxu0 %v518
    %799 = vmatmul.f32.gmra.mxu0 %v726
    %v800 = vpop.f32.mrf.mxu0
    %v801 = vadd.f32 %v752, %v800
    %802 = vmatmul.f32.gmra.mxu0 %v727
    %v803 = vpop.f32.mrf.mxu0
    %v804 = vadd.f32 %v752, %v803
    %805 = vmatmul.f32.gmra.mxu0 %v728
    %v806 = vpop.f32.mrf.mxu0
    %v807 = vadd.f32 %v752, %v806
    %808 = vmatmul.f32.gmra.mxu0 %v729
    %v809 = vpop.f32.mrf.mxu0
    %v810 = vadd.f32 %v752, %v809
    %811 = vmatmul.f32.gmra.mxu0 %v730
    %v812 = vpop.f32.mrf.mxu0
    %v813 = vadd.f32 %v752, %v812
    %814 = vmatmul.f32.gmra.mxu0 %v731
    %v815 = vpop.f32.mrf.mxu0
    %v816 = vadd.f32 %v752, %v815
    %817 = vmatmul.f32.gmra.mxu0 %v732
    %v818 = vpop.f32.mrf.mxu0
    %v819 = vadd.f32 %v752, %v818
    %820 = vmatmul.f32.gmra.mxu0 %v733
    %v821 = vpop.f32.mrf.mxu0
    %v822 = vadd.f32 %v752, %v821
    %823 = vmatmul.f32.gmra.mxu0 %v734
    %v824 = vpop.f32.mrf.mxu0
    %v825 = vadd.f32 %v752, %v824
    %826 = vmatmul.f32.gmra.mxu0 %v735
    %v827 = vpop.f32.mrf.mxu0
    %v828 = vadd.f32 %v752, %v827
    %829 = vmatmul.f32.gmra.mxu0 %v736
    %v830 = vpop.f32.mrf.mxu0
    %v831 = vadd.f32 %v752, %v830
    %832 = vmatmul.f32.gmra.mxu0 %v737
    %v833 = vpop.f32.mrf.mxu0
    %v834 = vadd.f32 %v752, %v833
    %835 = vdwg.mxu0
    %836 = vmatpush.msra.mxu0 %v549
    %837 = vmatpush.msra.mxu0 %v548
    %838 = vmatpush.msra.mxu0 %v547
    %839 = vmatpush.msra.mxu0 %v546
    %840 = vmatpush.msra.mxu0 %v545
    %841 = vmatpush.msra.mxu0 %v544
    %842 = vmatpush.msra.mxu0 %v543
    %843 = vmatpush.msra.mxu0 %v542
    %844 = vmatpush.msra.mxu0 %v541
    %845 = vmatpush.msra.mxu0 %v540
    %846 = vmatpush.msra.mxu0 %v539
    %847 = vmatpush.msra.mxu0 %v538
    %848 = vmatpush.msra.mxu0 %v537
    %849 = vmatpush.msra.mxu0 %v536
    %850 = vmatpush.msra.mxu0 %v535
    %851 = vmatpush.msra.mxu0 %v534
    %852 = vmatmul.f32.gmra.mxu0 %v739
    %v853 = vpop.f32.mrf.mxu0
    %v854 = vadd.f32 %v801, %v853
    %855 = vmatmul.f32.gmra.mxu0 %v740
    %v856 = vpop.f32.mrf.mxu0
    %v857 = vadd.f32 %v804, %v856
    %858 = vmatmul.f32.gmra.mxu0 %v741
    %v859 = vpop.f32.mrf.mxu0
    %v860 = vadd.f32 %v807, %v859
    %861 = vmatmul.f32.gmra.mxu0 %v742
    %v862 = vpop.f32.mrf.mxu0
    %v863 = vadd.f32 %v810, %v862
    %864 = vmatmul.f32.gmra.mxu0 %v743
    %v865 = vpop.f32.mrf.mxu0
    %v866 = vadd.f32 %v813, %v865
    %867 = vmatmul.f32.gmra.mxu0 %v744
    %v868 = vpop.f32.mrf.mxu0
    %v869 = vadd.f32 %v816, %v868
    %870 = vmatmul.f32.gmra.mxu0 %v745
    %v871 = vpop.f32.mrf.mxu0
    %v872 = vadd.f32 %v819, %v871
    %873 = vmatmul.f32.gmra.mxu0 %v746
    %v874 = vpop.f32.mrf.mxu0
    %v875 = vadd.f32 %v822, %v874
    %876 = vmatmul.f32.gmra.mxu0 %v747
    %v877 = vpop.f32.mrf.mxu0
    %v878 = vadd.f32 %v825, %v877
    %879 = vmatmul.f32.gmra.mxu0 %v748
    %v880 = vpop.f32.mrf.mxu0
    %v881 = vadd.f32 %v828, %v880
    %882 = vmatmul.f32.gmra.mxu0 %v749
    %v883 = vpop.f32.mrf.mxu0
    %v884 = vadd.f32 %v831, %v883
    %885 = vmatmul.f32.gmra.mxu0 %v750
    %v886 = vpop.f32.mrf.mxu0
    %v887 = vadd.f32 %v834, %v886
    %888 = vdwg.mxu0
    %889 = vmatpush.msra.mxu0 0.0
    %890 = vmatpush.msra.mxu0 0.0
    %891 = vmatpush.msra.mxu0 0.0
    %892 = vmatpush.msra.mxu0 0.0
    %893 = vmatpush.msra.mxu0 0.0
    %894 = vmatpush.msra.mxu0 0.0
    %895 = vmatpush.msra.mxu0 0.0
    %896 = vmatpush.msra.mxu0 0.0
    %897 = vmatpush.msra.mxu0 0.0
    %898 = vmatpush.msra.mxu0 0.0
    %899 = vmatpush.msra.mxu0 %v781
    %900 = vmatpush.msra.mxu0 %v554
    %901 = vmatpush.msra.mxu0 %v553
    %902 = vmatpush.msra.mxu0 %v552
    %903 = vmatpush.msra.mxu0 %v551
    %904 = vmatpush.msra.mxu0 %v550
    %905 = vmatmul.f32.gmra.mxu0 %v755
    %v906 = vpop.f32.mrf.mxu0
    %v907 = vadd.f32 %v854, %v906
    %908 = vmatmul.f32.gmra.mxu0 %v757
    %v909 = vpop.f32.mrf.mxu0
    %v910 = vadd.f32 %v857, %v909
    %911 = vmatmul.f32.gmra.mxu0 %v759
    %v912 = vpop.f32.mrf.mxu0
    %v913 = vadd.f32 %v860, %v912
    %914 = vmatmul.f32.gmra.mxu0 %v761
    %v915 = vpop.f32.mrf.mxu0
    %v916 = vadd.f32 %v863, %v915
    %917 = vmatmul.f32.gmra.mxu0 %v763
    %v918 = vpop.f32.mrf.mxu0
    %v919 = vadd.f32 %v866, %v918
    %920 = vmatmul.f32.gmra.mxu0 %v765
    %v921 = vpop.f32.mrf.mxu0
    %v922 = vadd.f32 %v869, %v921
    %923 = vmatmul.f32.gmra.mxu0 %v767
    %v924 = vpop.f32.mrf.mxu0
    %v925 = vadd.f32 %v872, %v924
    %926 = vmatmul.f32.gmra.mxu0 %v769
    %v927 = vpop.f32.mrf.mxu0
    %v928 = vadd.f32 %v875, %v927
    %929 = vmatmul.f32.gmra.mxu0 %v771
    %v930 = vpop.f32.mrf.mxu0
    %v931 = vadd.f32 %v878, %v930
    %932 = vmatmul.f32.gmra.mxu0 %v773
    %v933 = vpop.f32.mrf.mxu0
    %v934 = vadd.f32 %v881, %v933
    %935 = vmatmul.f32.gmra.mxu0 %v775
    %v936 = vpop.f32.mrf.mxu0
    %v937 = vadd.f32 %v884, %v936
    %938 = vmatmul.f32.gmra.mxu0 %v777
    %v939 = vpop.f32.mrf.mxu0
    %v940 = vadd.f32 %v887, %v939
    %941 = vdwg.mxu0
    %v942 = vtanh.pop %v907
    %v943 = vtanh.pop %v910
    %v944 = vtanh.pop %v913
    %v945 = vtanh.pop %v916
    %v946 = vtanh.pop %v919
    %v947 = vtanh.pop %v922
    %v948 = vtanh.pop %v925
    %v949 = vtanh.pop %v928
    %v950 = vtanh.pop %v931
    %v951 = vtanh.pop %v934
    %v952 = vtanh.pop %v937
    %v953 = vtanh.pop %v940
    %v954 = vld [vmem:[%s10] sm:$0xff]
    %v955 = vld [vmem:[%s10 + $0x8] sm:$0xff]
    %v956 = vld [vmem:[%s10 + $0x10] sm:$0xff]
    %v957 = vld [vmem:[%s10 + $0x18] sm:$0xff]
    %v958 = vld [vmem:[%s10 + $0x20] sm:$0xff]
    %v959 = vld [vmem:[%s10 + $0x28] sm:$0xff]
    %v960 = vld [vmem:[%s10 + $0x30] sm:$0x3]
    %v961 = vld [vmem:[%s11] sm:$0x1]
    %v963 = vperm.slane %v961, 0
    %vm965 = vcmask 408576
    %v967 = vsel %vm965, %v942, 0
    %v970 = vsel %vm965, %v943, 0
    %v973 = vsel %vm965, %v944, 0
    %v976 = vsel %vm965, %v945, 0
    %v979 = vsel %vm965, %v946, 0
    %v982 = vsel %vm965, %v947, 0
    %v985 = vsel %vm965, %v948, 0
    %v988 = vsel %vm965, %v949, 0
    %v991 = vsel %vm965, %v950, 0
    %v994 = vsel %vm965, %v951, 0
    %v997 = vsel %vm965, %v952, 0
    %v1000 = vsel %vm965, %v953, 0
    %v1003 = vsel %vm449, %v960, 0
    %1005 = vmatpush.msra.mxu0 0.0
    %1006 = vmatpush.msra.mxu0 0.0
    %1007 = vmatpush.msra.mxu0 0.0
    %1008 = vmatpush.msra.mxu0 0.0
    %1009 = vmatpush.msra.mxu0 0.0
    %1010 = vmatpush.msra.mxu0 0.0
    %1011 = vmatpush.msra.mxu0 0.0
    %1012 = vmatpush.msra.mxu0 0.0
    %1013 = vmatpush.msra.mxu0 0.0
    %1014 = vmatpush.msra.mxu0 %v1003
    %1015 = vmatpush.msra.mxu0 %v959
    %1016 = vmatpush.msra.mxu0 %v958
    %1017 = vmatpush.msra.mxu0 %v957
    %1018 = vmatpush.msra.mxu0 %v956
    %1019 = vmatpush.msra.mxu0 %v955
    %1020 = vmatpush.msra.mxu0 %v954
    %1021 = vmatmul.f32.gmra.mxu0 %v967
    %v1022 = vpop.f32.mrf.mxu0
    %v1023 = vadd.f32 %v963, %v1022
    %1024 = vmatmul.f32.gmra.mxu0 %v970
    %v1025 = vpop.f32.mrf.mxu0
    %v1026 = vadd.f32 %v963, %v1025
    %1027 = vmatmul.f32.gmra.mxu0 %v973
    %v1028 = vpop.f32.mrf.mxu0
    %v1029 = vadd.f32 %v963, %v1028
    %1030 = vmatmul.f32.gmra.mxu0 %v976
    %v1031 = vpop.f32.mrf.mxu0
    %v1032 = vadd.f32 %v963, %v1031
    %1033 = vmatmul.f32.gmra.mxu0 %v979
    %v1034 = vpop.f32.mrf.mxu0
    %v1035 = vadd.f32 %v963, %v1034
    %1036 = vmatmul.f32.gmra.mxu0 %v982
    %v1037 = vpop.f32.mrf.mxu0
    %v1038 = vadd.f32 %v963, %v1037
    %1039 = vmatmul.f32.gmra.mxu0 %v985
    %v1040 = vpop.f32.mrf.mxu0
    %v1041 = vadd.f32 %v963, %v1040
    %1042 = vmatmul.f32.gmra.mxu0 %v988
    %v1043 = vpop.f32.mrf.mxu0
    %v1044 = vadd.f32 %v963, %v1043
    %1045 = vmatmul.f32.gmra.mxu0 %v991
    %v1046 = vpop.f32.mrf.mxu0
    %v1047 = vadd.f32 %v963, %v1046
    %1048 = vmatmul.f32.gmra.mxu0 %v994
    %v1049 = vpop.f32.mrf.mxu0
    %v1050 = vadd.f32 %v963, %v1049
    %1051 = vmatmul.f32.gmra.mxu0 %v997
    %v1052 = vpop.f32.mrf.mxu0
    %v1053 = vadd.f32 %v963, %v1052
    %1054 = vmatmul.f32.gmra.mxu0 %v1000
    %v1055 = vpop.f32.mrf.mxu0
    %v1056 = vadd.f32 %v963, %v1055
    %1057 = vdwg.mxu0
    %v1058 = vmul.f32 %v1023, 1.442695
    %v1059 = vpow.pop %v1058
    %v1060 = vmul.f32 %v1026, 1.442695
    %v1061 = vpow.pop %v1060
    %v1062 = vmul.f32 %v1029, 1.442695
    %v1063 = vpow.pop %v1062
    %v1064 = vmul.f32 %v1032, 1.442695
    %v1065 = vpow.pop %v1064
    %v1066 = vld [vmem:[%s1] sm:$0xff]
    %v1067 = vld [vmem:[%s1 + $0x8] sm:$0xff]
    %v1068 = vld [vmem:[%s1 + $0x10] sm:$0xff]
    %v1069 = vld [vmem:[%s1 + $0x18] sm:$0xff]
    %1074 = vrot.lane.b32.xlu0 %v1066, 2
    %v1075 = vpop.permute.xlu0 %1074
    %1076 = vrot.lane.b32.xlu0 %v1067, 2
    %v1077 = vpop.permute.xlu0 %1076
    %1078 = vrot.lane.b32.xlu0 %v1068, 2
    %v1079 = vpop.permute.xlu0 %1078
    %1080 = vrot.lane.b32.xlu0 %v1069, 2
    %v1081 = vpop.permute.xlu0 %1080
    %v1086 = vmul.f32 %v1059, %v1075
    %v1087 = vmul.f32 %v1061, %v1077
    %v1088 = vmul.f32 %v1063, %v1079
    %v1089 = vmul.f32 %v1065, %v1081
    %vm1090 = vcmask 23568
    %v1091 = vsel %vm1090, %v1086, 0.0
    %v1092 = vrot.slane %v1091, 4
    %v1093 = vadd.f32 %v1091, %v1092
    %v1094 = vrot.slane %v1093, 2
    %v1095 = vadd.f32 %v1093, %v1094
    %v1096 = vrot.slane %v1095, 1
    %v1097 = vadd.f32 %v1095, %v1096
    %v1098 = vsel %vm1090, %v1087, 0.0
    %v1099 = vrot.slane %v1098, 4
    %v1100 = vadd.f32 %v1098, %v1099
    %v1101 = vrot.slane %v1100, 2
    %v1102 = vadd.f32 %v1100, %v1101
    %v1103 = vrot.slane %v1102, 1
    %v1104 = vadd.f32 %v1102, %v1103
    %v1105 = vsel %vm1090, %v1088, 0.0
    %v1106 = vrot.slane %v1105, 4
    %v1107 = vadd.f32 %v1105, %v1106
    %v1108 = vrot.slane %v1107, 2
    %v1109 = vadd.f32 %v1107, %v1108
    %v1110 = vrot.slane %v1109, 1
    %v1111 = vadd.f32 %v1109, %v1110
    %v1112 = vsel %vm1090, %v1089, 0.0
    %v1113 = vrot.slane %v1112, 4
    %v1114 = vadd.f32 %v1112, %v1113
    %v1115 = vrot.slane %v1114, 2
    %v1116 = vadd.f32 %v1114, %v1115
    %v1117 = vrot.slane %v1116, 1
    %v1118 = vadd.f32 %v1116, %v1117
    %v1119 = vadd.f32 %v1097, 1e-05
    %v1120 = vadd.f32 %v1104, 1e-05
    %v1121 = vadd.f32 %v1111, 1e-05
    %v1122 = vadd.f32 %v1118, 1e-05
    %v1123 = vrcp.pop %v1119
    %v1124 = vmul.f32 %v1119, %v1123
    %v1125 = vsub.f32 1.0, %v1124
    %v1126 = vmul.f32 %v1123, %v1125
    %v1127 = vadd.f32 %v1123, %v1126
    %vm1128 = vweird.f32 %v1119
    %vm1129 = vweird.f32 %v1123
    %vm1130 = vmor %vm1128, %vm1129
    %v1131 = vsel %vm1130, %v1123, %v1127
    %v1132 = vand.u32 2147483647, %v1119
    %vm1133 = vcmp.eq.f32.partialorder %v1132, 8.507059e+37
    %v1134 = vand.u32 %v1119, 2147483648
    %v1135 = vor.u32 1.1754944e-38, %v1134
    %v1136 = vsel %vm1133, %v1135, %v1131
    %v1137 = vmul.f32 %v1086, %v1136
    %v1138 = vrcp.pop %v1120
    %v1139 = vmul.f32 %v1120, %v1138
    %v1140 = vsub.f32 1.0, %v1139
    %v1141 = vmul.f32 %v1138, %v1140
    %v1142 = vadd.f32 %v1138, %v1141
    %vm1143 = vweird.f32 %v1120
    %vm1144 = vweird.f32 %v1138
    %vm1145 = vmor %vm1143, %vm1144
    %v1146 = vsel %vm1145, %v1138, %v1142
    %v1147 = vand.u32 2147483647, %v1120
    %vm1148 = vcmp.eq.f32.partialorder %v1147, 8.507059e+37
    %v1149 = vand.u32 %v1120, 2147483648
    %v1150 = vor.u32 1.1754944e-38, %v1149
    %v1151 = vsel %vm1148, %v1150, %v1146
    %v1152 = vmul.f32 %v1087, %v1151
    %v1153 = vrcp.pop %v1121
    %v1154 = vmul.f32 %v1121, %v1153
    %v1155 = vsub.f32 1.0, %v1154
    %v1156 = vmul.f32 %v1153, %v1155
    %v1157 = vadd.f32 %v1153, %v1156
    %vm1158 = vweird.f32 %v1121
    %vm1159 = vweird.f32 %v1153
    %vm1160 = vmor %vm1158, %vm1159
    %v1161 = vsel %vm1160, %v1153, %v1157
    %v1162 = vand.u32 2147483647, %v1121
    %vm1163 = vcmp.eq.f32.partialorder %v1162, 8.507059e+37
    %v1164 = vand.u32 %v1121, 2147483648
    %v1165 = vor.u32 1.1754944e-38, %v1164
    %v1166 = vsel %vm1163, %v1165, %v1161
    %v1167 = vmul.f32 %v1088, %v1166
    %v1168 = vrcp.pop %v1122
    %v1169 = vmul.f32 %v1122, %v1168
    %v1170 = vsub.f32 1.0, %v1169
    %v1171 = vmul.f32 %v1168, %v1170
    %v1172 = vadd.f32 %v1168, %v1171
    %vm1173 = vweird.f32 %v1122
    %vm1174 = vweird.f32 %v1168
    %vm1175 = vmor %vm1173, %vm1174
    %v1176 = vsel %vm1175, %v1168, %v1172
    %v1177 = vand.u32 2147483647, %v1122
    %vm1178 = vcmp.eq.f32.partialorder %v1177, 8.507059e+37
    %v1179 = vand.u32 %v1122, 2147483648
    %v1180 = vor.u32 1.1754944e-38, %v1179
    %v1181 = vsel %vm1178, %v1180, %v1176
    %v1182 = vmul.f32 %v1089, %v1181
    %1184 = vset.pattern.permute.xlu0 2
    %1185 = vperm.xlu0 %1184, %v1137
    %v1186 = vpop.permute.xlu0 %1185
    %1189 = vset.pattern.permute.xlu0 2
    %1190 = vperm.xlu0 %1189, %v1152
    %v1191 = vpop.permute.xlu0 %1190
    %1194 = vset.pattern.permute.xlu0 2
    %1195 = vperm.xlu0 %1194, %v1167
    %v1196 = vpop.permute.xlu0 %1195
    %1199 = vset.pattern.permute.xlu0 2
    %1200 = vperm.xlu0 %1199, %v1182
    %v1201 = vpop.permute.xlu0 %1200
    %v1203 = vmul.f32 %v1186, %v942
    %v1204 = vmul.f32 %v1191, %v943
    %v1205 = vmul.f32 %v1196, %v944
    %v1206 = vmul.f32 %v1201, %v945
    %v1207 = vsel %vm965, %v1203, 0.0
    %v1208 = vrot.slane %v1207, 4
    %v1209 = vadd.f32 %v1207, %v1208
    %v1210 = vrot.slane %v1209, 2
    %v1211 = vadd.f32 %v1209, %v1210
    %v1212 = vrot.slane %v1211, 1
    %v1213 = vadd.f32 %v1211, %v1212
    %v1214 = vsel %vm965, %v1204, 0.0
    %v1215 = vrot.slane %v1214, 4
    %v1216 = vadd.f32 %v1214, %v1215
    %v1217 = vrot.slane %v1216, 2
    %v1218 = vadd.f32 %v1216, %v1217
    %v1219 = vrot.slane %v1218, 1
    %v1220 = vadd.f32 %v1218, %v1219
    %v1221 = vsel %vm965, %v1205, 0.0
    %v1222 = vrot.slane %v1221, 4
    %v1223 = vadd.f32 %v1221, %v1222
    %v1224 = vrot.slane %v1223, 2
    %v1225 = vadd.f32 %v1223, %v1224
    %v1226 = vrot.slane %v1225, 1
    %v1227 = vadd.f32 %v1225, %v1226
    %v1228 = vsel %vm965, %v1206, 0.0
    %v1229 = vrot.slane %v1228, 4
    %v1230 = vadd.f32 %v1228, %v1229
    %v1231 = vrot.slane %v1230, 2
    %v1232 = vadd.f32 %v1230, %v1231
    %v1233 = vrot.slane %v1232, 1
    %v1234 = vadd.f32 %v1232, %v1233
    %v1235 = vmul.f32 %v1035, 1.442695
    %v1236 = vpow.pop %v1235
    %v1237 = vmul.f32 %v1038, 1.442695
    %v1238 = vpow.pop %v1237
    %v1239 = vmul.f32 %v1041, 1.442695
    %v1240 = vpow.pop %v1239
    %v1241 = vmul.f32 %v1044, 1.442695
    %v1242 = vpow.pop %v1241
    %v1243 = vmul.f32 %v1047, 1.442695
    %v1244 = vpow.pop %v1243
    %v1245 = vmul.f32 %v1050, 1.442695
    %v1246 = vpow.pop %v1245
    %v1247 = vmul.f32 %v1053, 1.442695
    %v1248 = vpow.pop %v1247
    %v1249 = vmul.f32 %v1056, 1.442695
    %v1250 = vpow.pop %v1249
    %v1251 = vld [vmem:[%s2] sm:$0xff]
    %v1252 = vld [vmem:[%s2 + $0x8] sm:$0xff]
    %v1253 = vld [vmem:[%s2 + $0x10] sm:$0xff]
    %v1254 = vld [vmem:[%s2 + $0x18] sm:$0xff]
    %v1255 = vld [vmem:[%s2 + $0x20] sm:$0xff]
    %v1256 = vld [vmem:[%s2 + $0x28] sm:$0xff]
    %v1257 = vld [vmem:[%s2 + $0x30] sm:$0xff]
    %v1258 = vld [vmem:[%s2 + $0x38] sm:$0xff]
    %1260 = vset.pattern.permute.xlu0 0
    %1261 = vperm.xlu0 %1260, %v1251
    %v1262 = vpop.permute.xlu0 %1261
    %1265 = vset.pattern.permute.xlu0 0
    %1266 = vperm.xlu0 %1265, %v1252
    %v1267 = vpop.permute.xlu0 %1266
    %1270 = vset.pattern.permute.xlu0 0
    %1271 = vperm.xlu0 %1270, %v1253
    %v1272 = vpop.permute.xlu0 %1271
    %1275 = vset.pattern.permute.xlu0 0
    %1276 = vperm.xlu0 %1275, %v1254
    %v1277 = vpop.permute.xlu0 %1276
    %1280 = vset.pattern.permute.xlu0 0
    %1281 = vperm.xlu0 %1280, %v1255
    %v1282 = vpop.permute.xlu0 %1281
    %1285 = vset.pattern.permute.xlu0 0
    %1286 = vperm.xlu0 %1285, %v1256
    %v1287 = vpop.permute.xlu0 %1286
    %1290 = vset.pattern.permute.xlu0 0
    %1291 = vperm.xlu0 %1290, %v1257
    %v1292 = vpop.permute.xlu0 %1291
    %1295 = vset.pattern.permute.xlu0 0
    %1296 = vperm.xlu0 %1295, %v1258
    %v1297 = vpop.permute.xlu0 %1296
    %v1299 = vmul.f32 %v1236, %v1262
    %v1300 = vmul.f32 %v1238, %v1267
    %v1301 = vmul.f32 %v1240, %v1272
    %v1302 = vmul.f32 %v1242, %v1277
    %v1303 = vmul.f32 %v1244, %v1282
    %v1304 = vmul.f32 %v1246, %v1287
    %v1305 = vmul.f32 %v1248, %v1292
    %v1306 = vmul.f32 %v1250, %v1297
    %vm1307 = vcmask 15360
    %v1308 = vsel %vm1307, %v1299, 0.0
    %v1309 = vsel %vm1307, %v1300, 0.0
    %v1310 = vadd.f32 %v1308, %v1309
    %v1311 = vrot.slane %v1310, 4
    %v1312 = vadd.f32 %v1310, %v1311
    %v1313 = vrot.slane %v1312, 2
    %v1314 = vadd.f32 %v1312, %v1313
    %v1315 = vrot.slane %v1314, 1
    %v1316 = vadd.f32 %v1314, %v1315
    %v1317 = vsel %vm1307, %v1301, 0.0
    %v1318 = vsel %vm1307, %v1302, 0.0
    %v1319 = vadd.f32 %v1317, %v1318
    %v1320 = vrot.slane %v1319, 4
    %v1321 = vadd.f32 %v1319, %v1320
    %v1322 = vrot.slane %v1321, 2
    %v1323 = vadd.f32 %v1321, %v1322
    %v1324 = vrot.slane %v1323, 1
    %v1325 = vadd.f32 %v1323, %v1324
    %v1326 = vsel %vm1307, %v1303, 0.0
    %v1327 = vsel %vm1307, %v1304, 0.0
    %v1328 = vadd.f32 %v1326, %v1327
    %v1329 = vrot.slane %v1328, 4
    %v1330 = vadd.f32 %v1328, %v1329
    %v1331 = vrot.slane %v1330, 2
    %v1332 = vadd.f32 %v1330, %v1331
    %v1333 = vrot.slane %v1332, 1
    %v1334 = vadd.f32 %v1332, %v1333
    %v1335 = vsel %vm1307, %v1305, 0.0
    %v1336 = vsel %vm1307, %v1306, 0.0
    %v1337 = vadd.f32 %v1335, %v1336
    %v1338 = vrot.slane %v1337, 4
    %v1339 = vadd.f32 %v1337, %v1338
    %v1340 = vrot.slane %v1339, 2
    %v1341 = vadd.f32 %v1339, %v1340
    %v1342 = vrot.slane %v1341, 1
    %v1343 = vadd.f32 %v1341, %v1342
    %v1344 = vadd.f32 %v1316, 1e-05
    %v1345 = vadd.f32 %v1325, 1e-05
    %v1346 = vadd.f32 %v1334, 1e-05
    %v1347 = vadd.f32 %v1343, 1e-05
    %v1348 = vrcp.pop %v1344
    %v1349 = vmul.f32 %v1344, %v1348
    %v1350 = vsub.f32 1.0, %v1349
    %v1351 = vmul.f32 %v1348, %v1350
    %v1352 = vadd.f32 %v1348, %v1351
    %vm1353 = vweird.f32 %v1344
    %vm1354 = vweird.f32 %v1348
    %vm1355 = vmor %vm1353, %vm1354
    %v1356 = vsel %vm1355, %v1348, %v1352
    %v1357 = vand.u32 2147483647, %v1344
    %vm1358 = vcmp.eq.f32.partialorder %v1357, 8.507059e+37
    %v1359 = vand.u32 %v1344, 2147483648
    %v1360 = vor.u32 1.1754944e-38, %v1359
    %v1361 = vsel %vm1358, %v1360, %v1356
    %v1362 = vmul.f32 %v1299, %v1361
    %v1363 = vmul.f32 %v1300, %v1361
    %v1364 = vrcp.pop %v1345
    %v1365 = vmul.f32 %v1345, %v1364
    %v1366 = vsub.f32 1.0, %v1365
    %v1367 = vmul.f32 %v1364, %v1366
    %v1368 = vadd.f32 %v1364, %v1367
    %vm1369 = vweird.f32 %v1345
    %vm1370 = vweird.f32 %v1364
    %vm1371 = vmor %vm1369, %vm1370
    %v1372 = vsel %vm1371, %v1364, %v1368
    %v1373 = vand.u32 2147483647, %v1345
    %vm1374 = vcmp.eq.f32.partialorder %v1373, 8.507059e+37
    %v1375 = vand.u32 %v1345, 2147483648
    %v1376 = vor.u32 1.1754944e-38, %v1375
    %v1377 = vsel %vm1374, %v1376, %v1372
    %v1378 = vmul.f32 %v1301, %v1377
    %v1379 = vmul.f32 %v1302, %v1377
    %v1380 = vrcp.pop %v1346
    %v1381 = vmul.f32 %v1346, %v1380
    %v1382 = vsub.f32 1.0, %v1381
    %v1383 = vmul.f32 %v1380, %v1382
    %v1384 = vadd.f32 %v1380, %v1383
    %vm1385 = vweird.f32 %v1346
    %vm1386 = vweird.f32 %v1380
    %vm1387 = vmor %vm1385, %vm1386
    %v1388 = vsel %vm1387, %v1380, %v1384
    %v1389 = vand.u32 2147483647, %v1346
    %vm1390 = vcmp.eq.f32.partialorder %v1389, 8.507059e+37
    %v1391 = vand.u32 %v1346, 2147483648
    %v1392 = vor.u32 1.1754944e-38, %v1391
    %v1393 = vsel %vm1390, %v1392, %v1388
    %v1394 = vmul.f32 %v1303, %v1393
    %v1395 = vmul.f32 %v1304, %v1393
    %v1396 = vrcp.pop %v1347
    %v1397 = vmul.f32 %v1347, %v1396
    %v1398 = vsub.f32 1.0, %v1397
    %v1399 = vmul.f32 %v1396, %v1398
    %v1400 = vadd.f32 %v1396, %v1399
    %vm1401 = vweird.f32 %v1347
    %vm1402 = vweird.f32 %v1396
    %vm1403 = vmor %vm1401, %vm1402
    %v1404 = vsel %vm1403, %v1396, %v1400
    %v1405 = vand.u32 2147483647, %v1347
    %vm1406 = vcmp.eq.f32.partialorder %v1405, 8.507059e+37
    %v1407 = vand.u32 %v1347, 2147483648
    %v1408 = vor.u32 1.1754944e-38, %v1407
    %v1409 = vsel %vm1406, %v1408, %v1404
    %v1410 = vmul.f32 %v1305, %v1409
    %v1411 = vmul.f32 %v1306, %v1409
    %1413 = vset.pattern.permute.xlu0 0
    %1414 = vperm.xlu0 %1413, %v1362
    %v1415 = vpop.permute.xlu0 %1414
    %1418 = vset.pattern.permute.xlu0 0
    %1419 = vperm.xlu0 %1418, %v1363
    %v1420 = vpop.permute.xlu0 %1419
    %1423 = vset.pattern.permute.xlu0 0
    %1424 = vperm.xlu0 %1423, %v1378
    %v1425 = vpop.permute.xlu0 %1424
    %1428 = vset.pattern.permute.xlu0 0
    %1429 = vperm.xlu0 %1428, %v1379
    %v1430 = vpop.permute.xlu0 %1429
    %1433 = vset.pattern.permute.xlu0 0
    %1434 = vperm.xlu0 %1433, %v1394
    %v1435 = vpop.permute.xlu0 %1434
    %1438 = vset.pattern.permute.xlu0 0
    %1439 = vperm.xlu0 %1438, %v1395
    %v1440 = vpop.permute.xlu0 %1439
    %1443 = vset.pattern.permute.xlu0 0
    %1444 = vperm.xlu0 %1443, %v1410
    %v1445 = vpop.permute.xlu0 %1444
    %1448 = vset.pattern.permute.xlu0 0
    %1449 = vperm.xlu0 %1448, %v1411
    %v1450 = vpop.permute.xlu0 %1449
    %v1452 = vmul.f32 %v1415, %v946
    %v1453 = vmul.f32 %v1420, %v947
    %v1454 = vmul.f32 %v1425, %v948
    %v1455 = vmul.f32 %v1430, %v949
    %v1456 = vmul.f32 %v1435, %v950
    %v1457 = vmul.f32 %v1440, %v951
    %v1458 = vmul.f32 %v1445, %v952
    %v1459 = vmul.f32 %v1450, %v953
    %v1460 = vsel %vm965, %v1452, 0.0
    %v1461 = vsel %vm965, %v1453, 0.0
    %v1462 = vadd.f32 %v1460, %v1461
    %v1463 = vrot.slane %v1462, 4
    %v1464 = vadd.f32 %v1462, %v1463
    %v1465 = vrot.slane %v1464, 2
    %v1466 = vadd.f32 %v1464, %v1465
    %v1467 = vrot.slane %v1466, 1
    %v1468 = vadd.f32 %v1466, %v1467
    %v1469 = vsel %vm965, %v1454, 0.0
    %v1470 = vsel %vm965, %v1455, 0.0
    %v1471 = vadd.f32 %v1469, %v1470
    %v1472 = vrot.slane %v1471, 4
    %v1473 = vadd.f32 %v1471, %v1472
    %v1474 = vrot.slane %v1473, 2
    %v1475 = vadd.f32 %v1473, %v1474
    %v1476 = vrot.slane %v1475, 1
    %v1477 = vadd.f32 %v1475, %v1476
    %v1478 = vsel %vm965, %v1456, 0.0
    %v1479 = vsel %vm965, %v1457, 0.0
    %v1480 = vadd.f32 %v1478, %v1479
    %v1481 = vrot.slane %v1480, 4
    %v1482 = vadd.f32 %v1480, %v1481
    %v1483 = vrot.slane %v1482, 2
    %v1484 = vadd.f32 %v1482, %v1483
    %v1485 = vrot.slane %v1484, 1
    %v1486 = vadd.f32 %v1484, %v1485
    %v1487 = vsel %vm965, %v1458, 0.0
    %v1488 = vsel %vm965, %v1459, 0.0
    %v1489 = vadd.f32 %v1487, %v1488
    %v1490 = vrot.slane %v1489, 4
    %v1491 = vadd.f32 %v1489, %v1490
    %v1492 = vrot.slane %v1491, 2
    %v1493 = vadd.f32 %v1491, %v1492
    %v1494 = vrot.slane %v1493, 1
    %v1495 = vadd.f32 %v1493, %v1494
    %1496 = vset.pattern.permute.xlu0 1
    %1497 = vperm.xlu0 %1496, %v1362
    %v1498 = vpop.permute.xlu0 %1497
    %1500 = vset.pattern.permute.xlu0 1
    %1501 = vperm.xlu0 %1500, %v1363
    %v1502 = vpop.permute.xlu0 %1501
    %1504 = vset.pattern.permute.xlu0 1
    %1505 = vperm.xlu0 %1504, %v1378
    %v1506 = vpop.permute.xlu0 %1505
    %1508 = vset.pattern.permute.xlu0 1
    %1509 = vperm.xlu0 %1508, %v1379
    %v1510 = vpop.permute.xlu0 %1509
    %1512 = vset.pattern.permute.xlu0 1
    %1513 = vperm.xlu0 %1512, %v1394
    %v1514 = vpop.permute.xlu0 %1513
    %1516 = vset.pattern.permute.xlu0 1
    %1517 = vperm.xlu0 %1516, %v1395
    %v1518 = vpop.permute.xlu0 %1517
    %1520 = vset.pattern.permute.xlu0 1
    %1521 = vperm.xlu0 %1520, %v1410
    %v1522 = vpop.permute.xlu0 %1521
    %1524 = vset.pattern.permute.xlu0 1
    %1525 = vperm.xlu0 %1524, %v1411
    %v1526 = vpop.permute.xlu0 %1525
    %v1528 = vmul.f32 %v1498, %v946
    %v1529 = vmul.f32 %v1502, %v947
    %v1530 = vmul.f32 %v1506, %v948
    %v1531 = vmul.f32 %v1510, %v949
    %v1532 = vmul.f32 %v1514, %v950
    %v1533 = vmul.f32 %v1518, %v951
    %v1534 = vmul.f32 %v1522, %v952
    %v1535 = vmul.f32 %v1526, %v953
    %v1536 = vsel %vm965, %v1528, 0.0
    %v1537 = vsel %vm965, %v1529, 0.0
    %v1538 = vadd.f32 %v1536, %v1537
    %v1539 = vrot.slane %v1538, 4
    %v1540 = vadd.f32 %v1538, %v1539
    %v1541 = vrot.slane %v1540, 2
    %v1542 = vadd.f32 %v1540, %v1541
    %v1543 = vrot.slane %v1542, 1
    %v1544 = vadd.f32 %v1542, %v1543
    %v1545 = vsel %vm965, %v1530, 0.0
    %v1546 = vsel %vm965, %v1531, 0.0
    %v1547 = vadd.f32 %v1545, %v1546
    %v1548 = vrot.slane %v1547, 4
    %v1549 = vadd.f32 %v1547, %v1548
    %v1550 = vrot.slane %v1549, 2
    %v1551 = vadd.f32 %v1549, %v1550
    %v1552 = vrot.slane %v1551, 1
    %v1553 = vadd.f32 %v1551, %v1552
    %v1554 = vsel %vm965, %v1532, 0.0
    %v1555 = vsel %vm965, %v1533, 0.0
    %v1556 = vadd.f32 %v1554, %v1555
    %v1557 = vrot.slane %v1556, 4
    %v1558 = vadd.f32 %v1556, %v1557
    %v1559 = vrot.slane %v1558, 2
    %v1560 = vadd.f32 %v1558, %v1559
    %v1561 = vrot.slane %v1560, 1
    %v1562 = vadd.f32 %v1560, %v1561
    %v1563 = vsel %vm965, %v1534, 0.0
    %v1564 = vsel %vm965, %v1535, 0.0
    %v1565 = vadd.f32 %v1563, %v1564
    %v1566 = vrot.slane %v1565, 4
    %v1567 = vadd.f32 %v1565, %v1566
    %v1568 = vrot.slane %v1567, 2
    %v1569 = vadd.f32 %v1567, %v1568
    %v1570 = vrot.slane %v1569, 1
    %v1571 = vadd.f32 %v1569, %v1570
    %v1572 = vmul.f32 %v1213, %v1468
    %v1573 = vmul.f32 %v1220, %v1477
    %v1574 = vmul.f32 %v1227, %v1486
    %v1575 = vmul.f32 %v1234, %v1495
    %v1576 = vsel %vm965, %v1572, 0.0
    %1577 = vadd.xlane.f32.xlu0 %v1576
    %v1578 = vpop.xlane.xlu0 %1577
    %v1579 = vsel %vm965, %v1573, 0.0
    %1580 = vadd.xlane.f32.xlu0 %v1579
    %v1581 = vpop.xlane.xlu0 %1580
    %v1582 = vsel %vm965, %v1574, 0.0
    %1583 = vadd.xlane.f32.xlu0 %v1582
    %v1584 = vpop.xlane.xlu0 %1583
    %v1585 = vsel %vm965, %v1575, 0.0
    %1586 = vadd.xlane.f32.xlu0 %v1585
    %v1587 = vpop.xlane.xlu0 %1586
    %v1588 = vmul.f32 %v1213, %v1213
    %v1589 = vmul.f32 %v1220, %v1220
    %v1590 = vmul.f32 %v1227, %v1227
    %v1591 = vmul.f32 %v1234, %v1234
    %v1592 = vsel %vm965, %v1588, 0.0
    %1593 = vadd.xlane.f32.xlu0 %v1592
    %v1594 = vpop.xlane.xlu0 %1593
    %v1595 = vsel %vm965, %v1589, 0.0
    %1596 = vadd.xlane.f32.xlu0 %v1595
    %v1597 = vpop.xlane.xlu0 %1596
    %v1598 = vsel %vm965, %v1590, 0.0
    %1599 = vadd.xlane.f32.xlu0 %v1598
    %v1600 = vpop.xlane.xlu0 %1599
    %v1601 = vsel %vm965, %v1591, 0.0
    %1602 = vadd.xlane.f32.xlu0 %v1601
    %v1603 = vpop.xlane.xlu0 %1602
    %v1604 = vmul.f32 %v1468, %v1468
    %v1605 = vmul.f32 %v1477, %v1477
    %v1606 = vmul.f32 %v1486, %v1486
    %v1607 = vmul.f32 %v1495, %v1495
    %v1608 = vsel %vm965, %v1604, 0.0
    %1609 = vadd.xlane.f32.xlu0 %v1608
    %v1610 = vpop.xlane.xlu0 %1609
    %v1611 = vsel %vm965, %v1605, 0.0
    %1612 = vadd.xlane.f32.xlu0 %v1611
    %v1613 = vpop.xlane.xlu0 %1612
    %v1614 = vsel %vm965, %v1606, 0.0
    %1615 = vadd.xlane.f32.xlu0 %v1614
    %v1616 = vpop.xlane.xlu0 %1615
    %v1617 = vsel %vm965, %v1607, 0.0
    %1618 = vadd.xlane.f32.xlu0 %v1617
    %v1619 = vpop.xlane.xlu0 %1618
    %v1620 = vmul.f32 %v1594, %v1610
    %v1621 = vmul.f32 %v1597, %v1613
    %v1622 = vmul.f32 %v1600, %v1616
    %v1623 = vmul.f32 %v1603, %v1619
    %v1624 = vmax.f32 %v1620, 1e-12
    %v1625 = vmax.f32 %v1621, 1e-12
    %v1626 = vmax.f32 %v1622, 1e-12
    %v1627 = vmax.f32 %v1623, 1e-12
    %v1628 = vrsqrt.pop %v1624
    %v1629 = vmul.f32 %v1628, %v1624
    %v1630 = vmul.f32 %v1629, %v1628
    %v1631 = vmul.f32 0.5, %v1630
    %v1632 = vsub.f32 1.5, %v1631
    %v1633 = vmul.f32 %v1628, %v1632
    %v1634 = vmul.f32 %v1624, %v1633
    %vm1635 = vcmp.eq.f32.partialorder %v1624, inf
    %v1636 = vsel %vm1635, %v1624, %v1634
    %vm1637 = vcmp.eq.f32.partialorder %v1624, 0.0
    %v1638 = vand.u32 %v1624, 2147483648
    %v1639 = vsel %vm1637, %v1638, %v1636
    %v1640 = vrsqrt.pop %v1625
    %v1641 = vmul.f32 %v1640, %v1625
    %v1642 = vmul.f32 %v1641, %v1640
    %v1643 = vmul.f32 0.5, %v1642
    %v1644 = vsub.f32 1.5, %v1643
    %v1645 = vmul.f32 %v1640, %v1644
    %v1646 = vmul.f32 %v1625, %v1645
    %vm1647 = vcmp.eq.f32.partialorder %v1625, inf
    %v1648 = vsel %vm1647, %v1625, %v1646
    %vm1649 = vcmp.eq.f32.partialorder %v1625, 0.0
    %v1650 = vand.u32 %v1625, 2147483648
    %v1651 = vsel %vm1649, %v1650, %v1648
    %v1652 = vrsqrt.pop %v1626
    %v1653 = vmul.f32 %v1652, %v1626
    %v1654 = vmul.f32 %v1653, %v1652
    %v1655 = vmul.f32 0.5, %v1654
    %v1656 = vsub.f32 1.5, %v1655
    %v1657 = vmul.f32 %v1652, %v1656
    %v1658 = vmul.f32 %v1626, %v1657
    %vm1659 = vcmp.eq.f32.partialorder %v1626, inf
    %v1660 = vsel %vm1659, %v1626, %v1658
    %vm1661 = vcmp.eq.f32.partialorder %v1626, 0.0
    %v1662 = vand.u32 %v1626, 2147483648
    %v1663 = vsel %vm1661, %v1662, %v1660
    %v1664 = vrsqrt.pop %v1627
    %v1665 = vmul.f32 %v1664, %v1627
    %v1666 = vmul.f32 %v1665, %v1664
    %v1667 = vmul.f32 0.5, %v1666
    %v1668 = vsub.f32 1.5, %v1667
    %v1669 = vmul.f32 %v1664, %v1668
    %v1670 = vmul.f32 %v1627, %v1669
    %vm1671 = vcmp.eq.f32.partialorder %v1627, inf
    %v1672 = vsel %vm1671, %v1627, %v1670
    %vm1673 = vcmp.eq.f32.partialorder %v1627, 0.0
    %v1674 = vand.u32 %v1627, 2147483648
    %v1675 = vsel %vm1673, %v1674, %v1672
    %v1676 = vrcp.pop %v1639
    %v1677 = vmul.f32 %v1639, %v1676
    %v1678 = vsub.f32 1.0, %v1677
    %v1679 = vmul.f32 %v1676, %v1678
    %v1680 = vadd.f32 %v1676, %v1679
    %vm1681 = vweird.f32 %v1639
    %vm1682 = vweird.f32 %v1676
    %vm1683 = vmor %vm1681, %vm1682
    %v1684 = vsel %vm1683, %v1676, %v1680
    %v1685 = vand.u32 2147483647, %v1639
    %vm1686 = vcmp.eq.f32.partialorder %v1685, 8.507059e+37
    %v1687 = vand.u32 %v1639, 2147483648
    %v1688 = vor.u32 1.1754944e-38, %v1687
    %v1689 = vsel %vm1686, %v1688, %v1684
    %v1690 = vmul.f32 %v1578, %v1689
    %v1691 = vrcp.pop %v1651
    %v1692 = vmul.f32 %v1651, %v1691
    %v1693 = vsub.f32 1.0, %v1692
    %v1694 = vmul.f32 %v1691, %v1693
    %v1695 = vadd.f32 %v1691, %v1694
    %vm1696 = vweird.f32 %v1651
    %vm1697 = vweird.f32 %v1691
    %vm1698 = vmor %vm1696, %vm1697
    %v1699 = vsel %vm1698, %v1691, %v1695
    %v1700 = vand.u32 2147483647, %v1651
    %vm1701 = vcmp.eq.f32.partialorder %v1700, 8.507059e+37
    %v1702 = vand.u32 %v1651, 2147483648
    %v1703 = vor.u32 1.1754944e-38, %v1702
    %v1704 = vsel %vm1701, %v1703, %v1699
    %v1705 = vmul.f32 %v1581, %v1704
    %v1706 = vrcp.pop %v1663
    %v1707 = vmul.f32 %v1663, %v1706
    %v1708 = vsub.f32 1.0, %v1707
    %v1709 = vmul.f32 %v1706, %v1708
    %v1710 = vadd.f32 %v1706, %v1709
    %vm1711 = vweird.f32 %v1663
    %vm1712 = vweird.f32 %v1706
    %vm1713 = vmor %vm1711, %vm1712
    %v1714 = vsel %vm1713, %v1706, %v1710
    %v1715 = vand.u32 2147483647, %v1663
    %vm1716 = vcmp.eq.f32.partialorder %v1715, 8.507059e+37
    %v1717 = vand.u32 %v1663, 2147483648
    %v1718 = vor.u32 1.1754944e-38, %v1717
    %v1719 = vsel %vm1716, %v1718, %v1714
    %v1720 = vmul.f32 %v1584, %v1719
    %v1721 = vrcp.pop %v1675
    %v1722 = vmul.f32 %v1675, %v1721
    %v1723 = vsub.f32 1.0, %v1722
    %v1724 = vmul.f32 %v1721, %v1723
    %v1725 = vadd.f32 %v1721, %v1724
    %vm1726 = vweird.f32 %v1675
    %vm1727 = vweird.f32 %v1721
    %vm1728 = vmor %vm1726, %vm1727
    %v1729 = vsel %vm1728, %v1721, %v1725
    %v1730 = vand.u32 2147483647, %v1675
    %vm1731 = vcmp.eq.f32.partialorder %v1730, 8.507059e+37
    %v1732 = vand.u32 %v1675, 2147483648
    %v1733 = vor.u32 1.1754944e-38, %v1732
    %v1734 = vsel %vm1731, %v1733, %v1729
    %v1735 = vmul.f32 %v1587, %v1734
    %v1736 = vmul.f32 %v1213, %v1544
    %v1737 = vmul.f32 %v1220, %v1553
    %v1738 = vmul.f32 %v1227, %v1562
    %v1739 = vmul.f32 %v1234, %v1571
    %v1740 = vsel %vm965, %v1736, 0.0
    %1741 = vadd.xlane.f32.xlu0 %v1740
    %v1742 = vpop.xlane.xlu0 %1741
    %v1743 = vsel %vm965, %v1737, 0.0
    %1744 = vadd.xlane.f32.xlu0 %v1743
    %v1745 = vpop.xlane.xlu0 %1744
    %v1746 = vsel %vm965, %v1738, 0.0
    %1747 = vadd.xlane.f32.xlu0 %v1746
    %v1748 = vpop.xlane.xlu0 %1747
    %v1749 = vsel %vm965, %v1739, 0.0
    %1750 = vadd.xlane.f32.xlu0 %v1749
    %v1751 = vpop.xlane.xlu0 %1750
    %v1752 = vmul.f32 %v1544, %v1544
    %v1753 = vmul.f32 %v1553, %v1553
    %v1754 = vmul.f32 %v1562, %v1562
    %v1755 = vmul.f32 %v1571, %v1571
    %v1756 = vsel %vm965, %v1752, 0.0
    %1757 = vadd.xlane.f32.xlu0 %v1756
    %v1758 = vpop.xlane.xlu0 %1757
    %v1759 = vsel %vm965, %v1753, 0.0
    %1760 = vadd.xlane.f32.xlu0 %v1759
    %v1761 = vpop.xlane.xlu0 %1760
    %v1762 = vsel %vm965, %v1754, 0.0
    %1763 = vadd.xlane.f32.xlu0 %v1762
    %v1764 = vpop.xlane.xlu0 %1763
    %v1765 = vsel %vm965, %v1755, 0.0
    %1766 = vadd.xlane.f32.xlu0 %v1765
    %v1767 = vpop.xlane.xlu0 %1766
    %v1768 = vmul.f32 %v1594, %v1758
    %v1769 = vmul.f32 %v1597, %v1761
    %v1770 = vmul.f32 %v1600, %v1764
    %v1771 = vmul.f32 %v1603, %v1767
    %v1772 = vmax.f32 %v1768, 1e-12
    %v1773 = vmax.f32 %v1769, 1e-12
    %v1774 = vmax.f32 %v1770, 1e-12
    %v1775 = vmax.f32 %v1771, 1e-12
    %v1776 = vrsqrt.pop %v1772
    %v1777 = vmul.f32 %v1776, %v1772
    %v1778 = vmul.f32 %v1777, %v1776
    %v1779 = vmul.f32 0.5, %v1778
    %v1780 = vsub.f32 1.5, %v1779
    %v1781 = vmul.f32 %v1776, %v1780
    %v1782 = vmul.f32 %v1772, %v1781
    %vm1783 = vcmp.eq.f32.partialorder %v1772, inf
    %v1784 = vsel %vm1783, %v1772, %v1782
    %vm1785 = vcmp.eq.f32.partialorder %v1772, 0.0
    %v1786 = vand.u32 %v1772, 2147483648
    %v1787 = vsel %vm1785, %v1786, %v1784
    %v1788 = vrsqrt.pop %v1773
    %v1789 = vmul.f32 %v1788, %v1773
    %v1790 = vmul.f32 %v1789, %v1788
    %v1791 = vmul.f32 0.5, %v1790
    %v1792 = vsub.f32 1.5, %v1791
    %v1793 = vmul.f32 %v1788, %v1792
    %v1794 = vmul.f32 %v1773, %v1793
    %vm1795 = vcmp.eq.f32.partialorder %v1773, inf
    %v1796 = vsel %vm1795, %v1773, %v1794
    %vm1797 = vcmp.eq.f32.partialorder %v1773, 0.0
    %v1798 = vand.u32 %v1773, 2147483648
    %v1799 = vsel %vm1797, %v1798, %v1796
    %v1800 = vrsqrt.pop %v1774
    %v1801 = vmul.f32 %v1800, %v1774
    %v1802 = vmul.f32 %v1801, %v1800
    %v1803 = vmul.f32 0.5, %v1802
    %v1804 = vsub.f32 1.5, %v1803
    %v1805 = vmul.f32 %v1800, %v1804
    %v1806 = vmul.f32 %v1774, %v1805
    %vm1807 = vcmp.eq.f32.partialorder %v1774, inf
    %v1808 = vsel %vm1807, %v1774, %v1806
    %vm1809 = vcmp.eq.f32.partialorder %v1774, 0.0
    %v1810 = vand.u32 %v1774, 2147483648
    %v1811 = vsel %vm1809, %v1810, %v1808
    %v1812 = vrsqrt.pop %v1775
    %v1813 = vmul.f32 %v1812, %v1775
    %v1814 = vmul.f32 %v1813, %v1812
    %v1815 = vmul.f32 0.5, %v1814
    %v1816 = vsub.f32 1.5, %v1815
    %v1817 = vmul.f32 %v1812, %v1816
    %v1818 = vmul.f32 %v1775, %v1817
    %vm1819 = vcmp.eq.f32.partialorder %v1775, inf
    %v1820 = vsel %vm1819, %v1775, %v1818
    %vm1821 = vcmp.eq.f32.partialorder %v1775, 0.0
    %v1822 = vand.u32 %v1775, 2147483648
    %v1823 = vsel %vm1821, %v1822, %v1820
    %v1824 = vrcp.pop %v1787
    %v1825 = vmul.f32 %v1787, %v1824
    %v1826 = vsub.f32 1.0, %v1825
    %v1827 = vmul.f32 %v1824, %v1826
    %v1828 = vadd.f32 %v1824, %v1827
    %vm1829 = vweird.f32 %v1787
    %vm1830 = vweird.f32 %v1824
    %vm1831 = vmor %vm1829, %vm1830
    %v1832 = vsel %vm1831, %v1824, %v1828
    %v1833 = vand.u32 2147483647, %v1787
    %vm1834 = vcmp.eq.f32.partialorder %v1833, 8.507059e+37
    %v1835 = vand.u32 %v1787, 2147483648
    %v1836 = vor.u32 1.1754944e-38, %v1835
    %v1837 = vsel %vm1834, %v1836, %v1832
    %v1838 = vmul.f32 %v1742, %v1837
    %v1839 = vrcp.pop %v1799
    %v1840 = vmul.f32 %v1799, %v1839
    %v1841 = vsub.f32 1.0, %v1840
    %v1842 = vmul.f32 %v1839, %v1841
    %v1843 = vadd.f32 %v1839, %v1842
    %vm1844 = vweird.f32 %v1799
    %vm1845 = vweird.f32 %v1839
    %vm1846 = vmor %vm1844, %vm1845
    %v1847 = vsel %vm1846, %v1839, %v1843
    %v1848 = vand.u32 2147483647, %v1799
    %vm1849 = vcmp.eq.f32.partialorder %v1848, 8.507059e+37
    %v1850 = vand.u32 %v1799, 2147483648
    %v1851 = vor.u32 1.1754944e-38, %v1850
    %v1852 = vsel %vm1849, %v1851, %v1847
    %v1853 = vmul.f32 %v1745, %v1852
    %v1854 = vrcp.pop %v1811
    %v1855 = vmul.f32 %v1811, %v1854
    %v1856 = vsub.f32 1.0, %v1855
    %v1857 = vmul.f32 %v1854, %v1856
    %v1858 = vadd.f32 %v1854, %v1857
    %vm1859 = vweird.f32 %v1811
    %vm1860 = vweird.f32 %v1854
    %vm1861 = vmor %vm1859, %vm1860
    %v1862 = vsel %vm1861, %v1854, %v1858
    %v1863 = vand.u32 2147483647, %v1811
    %vm1864 = vcmp.eq.f32.partialorder %v1863, 8.507059e+37
    %v1865 = vand.u32 %v1811, 2147483648
    %v1866 = vor.u32 1.1754944e-38, %v1865
    %v1867 = vsel %vm1864, %v1866, %v1862
    %v1868 = vmul.f32 %v1748, %v1867
    %v1869 = vrcp.pop %v1823
    %v1870 = vmul.f32 %v1823, %v1869
    %v1871 = vsub.f32 1.0, %v1870
    %v1872 = vmul.f32 %v1869, %v1871
    %v1873 = vadd.f32 %v1869, %v1872
    %vm1874 = vweird.f32 %v1823
    %vm1875 = vweird.f32 %v1869
    %vm1876 = vmor %vm1874, %vm1875
    %v1877 = vsel %vm1876, %v1869, %v1873
    %v1878 = vand.u32 2147483647, %v1823
    %vm1879 = vcmp.eq.f32.partialorder %v1878, 8.507059e+37
    %v1880 = vand.u32 %v1823, 2147483648
    %v1881 = vor.u32 1.1754944e-38, %v1880
    %v1882 = vsel %vm1879, %v1881, %v1877
    %v1883 = vmul.f32 %v1751, %v1882
    %v1884 = vmax.f32 %v1690, %v1838
    %v1885 = vmax.f32 %v1705, %v1853
    %v1886 = vmax.f32 %v1720, %v1868
    %v1887 = vmax.f32 %v1735, %v1883
    %v1888 = vmax.f32 %v1884, 0.0
    %v1889 = vmax.f32 %v1885, 0.0
    %v1890 = vmax.f32 %v1886, 0.0
    %v1891 = vmax.f32 %v1887, 0.0
    %v1892 = vmin.f32 %v1888, 1.0
    %v1893 = vmin.f32 %v1889, 1.0
    %v1894 = vmin.f32 %v1890, 1.0
    %v1895 = vmin.f32 %v1891, 1.0
    %v1896 = vld [vmem:[%s5] sm:$0xf]
    %v1897 = vlog2.pop %v1892
    %v1898 = vmul.f32 %v1897, 0.6931472
    %v1899 = vlog2.pop %v1893
    %v1900 = vmul.f32 %v1899, 0.6931472
    %v1901 = vlog2.pop %v1894
    %v1902 = vmul.f32 %v1901, 0.6931472
    %v1903 = vlog2.pop %v1895
    %v1904 = vmul.f32 %v1903, 0.6931472
    %v1905 = vmax.f32 %v1898, -100.0
    %v1906 = vmax.f32 %v1900, -100.0
    %v1907 = vmax.f32 %v1902, -100.0
    %v1908 = vmax.f32 %v1904, -100.0
    %v1909 = vsub.f32 1.0, %v1892
    %v1910 = vsub.f32 1.0, %v1893
    %v1911 = vsub.f32 1.0, %v1894
    %v1912 = vsub.f32 1.0, %v1895
    %v1913 = vlog2.pop %v1909
    %v1914 = vmul.f32 %v1913, 0.6931472
    %v1915 = vlog2.pop %v1910
    %v1916 = vmul.f32 %v1915, 0.6931472
    %v1917 = vlog2.pop %v1911
    %v1918 = vmul.f32 %v1917, 0.6931472
    %v1919 = vlog2.pop %v1912
    %v1920 = vmul.f32 %v1919, 0.6931472
    %v1921 = vmax.f32 %v1914, -100.0
    %v1922 = vmax.f32 %v1916, -100.0
    %v1923 = vmax.f32 %v1918, -100.0
    %v1924 = vmax.f32 %v1920, -100.0
    %vm1929 = vcmask 1041409
    %v1930 = vsel %vm1929, %v1906, %v1905
    %vm1931 = vcmask 1042434
    %v1932 = vsel %vm1931, %v1907, %v1930
    %vm1933 = vcmask 1043459
    %v1934 = vsel %vm1933, %v1908, %v1932
    %v1936 = vmul.f32 %v1896, %v1934
    %v1937 = vsub.f32 1.0, %v1896
    %v1942 = vsel %vm1929, %v1922, %v1921
    %v1943 = vsel %vm1931, %v1923, %v1942
    %v1944 = vsel %vm1933, %v1924, %v1943
    %v1946 = vmul.f32 %v1937, %v1944
    %v1947 = vadd.f32 %v1936, %v1946
    %vm1948 = vcmask 3072
    %v1949 = vsel %vm1948, %v1947, 0.0
    %1950 = vadd.xlane.f32.xlu0 %v1949
    %v1951 = vpop.xlane.xlu0 %1950
    %v1952 = vrot.slane %v1951, 4
    %v1953 = vadd.f32 %v1951, %v1952
    %v1954 = vrot.slane %v1953, 2
    %v1955 = vadd.f32 %v1953, %v1954
    %v1956 = vrot.slane %v1955, 1
    %v1957 = vadd.f32 %v1955, %v1956
    %s1958 = vtos %v1957
    %v1959 = vrcp.pop 4.0
    %v1960 = vmul.f32 4.0, %v1959
    %v1961 = vsub.f32 1.0, %v1960
    %v1962 = vmul.f32 %v1959, %v1961
    %v1963 = vadd.f32 %v1959, %v1962
    %vm1964 = vweird.f32 %v1959
    %v1965 = vsel %vm1964, %v1959, %v1963
    %s1966 = vtos %v1965
    %s1967 = smul.f32 %s1958, %s1966
    %s1968 = ssub.f32 0.0, %s1967
    %v1969 = vmul.f32 %v1362, %v1362
    %v1970 = vmul.f32 %v1363, %v1363
    %v1971 = vmul.f32 %v1378, %v1378
    %v1972 = vmul.f32 %v1379, %v1379
    %v1973 = vmul.f32 %v1394, %v1394
    %v1974 = vmul.f32 %v1395, %v1395
    %v1975 = vmul.f32 %v1410, %v1410
    %v1976 = vmul.f32 %v1411, %v1411
    %v1977 = vsel %vm1307, %v1969, 0.0
    %1978 = vadd.xlane.f32.xlu0 %v1977
    %v1979 = vpop.xlane.xlu0 %1978
    %v1980 = vsel %vm1307, %v1970, 0.0
    %1981 = vadd.xlane.f32.xlu0 %v1980
    %v1982 = vpop.xlane.xlu0 %1981
    %v1983 = vsel %vm1307, %v1971, 0.0
    %1984 = vadd.xlane.f32.xlu0 %v1983
    %v1985 = vpop.xlane.xlu0 %1984
    %v1986 = vsel %vm1307, %v1972, 0.0
    %1987 = vadd.xlane.f32.xlu0 %v1986
    %v1988 = vpop.xlane.xlu0 %1987
    %v1989 = vsel %vm1307, %v1973, 0.0
    %1990 = vadd.xlane.f32.xlu0 %v1989
    %v1991 = vpop.xlane.xlu0 %1990
    %v1992 = vsel %vm1307, %v1974, 0.0
    %1993 = vadd.xlane.f32.xlu0 %v1992
    %v1994 = vpop.xlane.xlu0 %1993
    %v1995 = vsel %vm1307, %v1975, 0.0
    %1996 = vadd.xlane.f32.xlu0 %v1995
    %v1997 = vpop.xlane.xlu0 %1996
    %v1998 = vsel %vm1307, %v1976, 0.0
    %1999 = vadd.xlane.f32.xlu0 %v1998
    %v2000 = vpop.xlane.xlu0 %1999
    %v2001 = vrsqrt.pop %v1979
    %v2002 = vmul.f32 %v2001, %v1979
    %v2003 = vmul.f32 %v2002, %v2001
    %v2004 = vmul.f32 0.5, %v2003
    %v2005 = vsub.f32 1.5, %v2004
    %v2006 = vmul.f32 %v2001, %v2005
    %v2007 = vmul.f32 %v1979, %v2006
    %vm2008 = vcmp.eq.f32.partialorder %v1979, inf
    %v2009 = vsel %vm2008, %v1979, %v2007
    %vm2010 = vcmp.eq.f32.partialorder %v1979, 0.0
    %v2011 = vand.u32 %v1979, 2147483648
    %v2012 = vsel %vm2010, %v2011, %v2009
    %v2013 = vrsqrt.pop %v1982
    %v2014 = vmul.f32 %v2013, %v1982
    %v2015 = vmul.f32 %v2014, %v2013
    %v2016 = vmul.f32 0.5, %v2015
    %v2017 = vsub.f32 1.5, %v2016
    %v2018 = vmul.f32 %v2013, %v2017
    %v2019 = vmul.f32 %v1982, %v2018
    %vm2020 = vcmp.eq.f32.partialorder %v1982, inf
    %v2021 = vsel %vm2020, %v1982, %v2019
    %vm2022 = vcmp.eq.f32.partialorder %v1982, 0.0
    %v2023 = vand.u32 %v1982, 2147483648
    %v2024 = vsel %vm2022, %v2023, %v2021
    %v2025 = vrsqrt.pop %v1985
    %v2026 = vmul.f32 %v2025, %v1985
    %v2027 = vmul.f32 %v2026, %v2025
    %v2028 = vmul.f32 0.5, %v2027
    %v2029 = vsub.f32 1.5, %v2028
    %v2030 = vmul.f32 %v2025, %v2029
    %v2031 = vmul.f32 %v1985, %v2030
    %vm2032 = vcmp.eq.f32.partialorder %v1985, inf
    %v2033 = vsel %vm2032, %v1985, %v2031
    %vm2034 = vcmp.eq.f32.partialorder %v1985, 0.0
    %v2035 = vand.u32 %v1985, 2147483648
    %v2036 = vsel %vm2034, %v2035, %v2033
    %v2037 = vrsqrt.pop %v1988
    %v2038 = vmul.f32 %v2037, %v1988
    %v2039 = vmul.f32 %v2038, %v2037
    %v2040 = vmul.f32 0.5, %v2039
    %v2041 = vsub.f32 1.5, %v2040
    %v2042 = vmul.f32 %v2037, %v2041
    %v2043 = vmul.f32 %v1988, %v2042
    %vm2044 = vcmp.eq.f32.partialorder %v1988, inf
    %v2045 = vsel %vm2044, %v1988, %v2043
    %vm2046 = vcmp.eq.f32.partialorder %v1988, 0.0
    %v2047 = vand.u32 %v1988, 2147483648
    %v2048 = vsel %vm2046, %v2047, %v2045
    %v2049 = vrsqrt.pop %v1991
    %v2050 = vmul.f32 %v2049, %v1991
    %v2051 = vmul.f32 %v2050, %v2049
    %v2052 = vmul.f32 0.5, %v2051
    %v2053 = vsub.f32 1.5, %v2052
    %v2054 = vmul.f32 %v2049, %v2053
    %v2055 = vmul.f32 %v1991, %v2054
    %vm2056 = vcmp.eq.f32.partialorder %v1991, inf
    %v2057 = vsel %vm2056, %v1991, %v2055
    %vm2058 = vcmp.eq.f32.partialorder %v1991, 0.0
    %v2059 = vand.u32 %v1991, 2147483648
    %v2060 = vsel %vm2058, %v2059, %v2057
    %v2061 = vrsqrt.pop %v1994
    %v2062 = vmul.f32 %v2061, %v1994
    %v2063 = vmul.f32 %v2062, %v2061
    %v2064 = vmul.f32 0.5, %v2063
    %v2065 = vsub.f32 1.5, %v2064
    %v2066 = vmul.f32 %v2061, %v2065
    %v2067 = vmul.f32 %v1994, %v2066
    %vm2068 = vcmp.eq.f32.partialorder %v1994, inf
    %v2069 = vsel %vm2068, %v1994, %v2067
    %vm2070 = vcmp.eq.f32.partialorder %v1994, 0.0
    %v2071 = vand.u32 %v1994, 2147483648
    %v2072 = vsel %vm2070, %v2071, %v2069
    %v2073 = vrsqrt.pop %v1997
    %v2074 = vmul.f32 %v2073, %v1997
    %v2075 = vmul.f32 %v2074, %v2073
    %v2076 = vmul.f32 0.5, %v2075
    %v2077 = vsub.f32 1.5, %v2076
    %v2078 = vmul.f32 %v2073, %v2077
    %v2079 = vmul.f32 %v1997, %v2078
    %vm2080 = vcmp.eq.f32.partialorder %v1997, inf
    %v2081 = vsel %vm2080, %v1997, %v2079
    %vm2082 = vcmp.eq.f32.partialorder %v1997, 0.0
    %v2083 = vand.u32 %v1997, 2147483648
    %v2084 = vsel %vm2082, %v2083, %v2081
    %v2085 = vrsqrt.pop %v2000
    %v2086 = vmul.f32 %v2085, %v2000
    %v2087 = vmul.f32 %v2086, %v2085
    %v2088 = vmul.f32 0.5, %v2087
    %v2089 = vsub.f32 1.5, %v2088
    %v2090 = vmul.f32 %v2085, %v2089
    %v2091 = vmul.f32 %v2000, %v2090
    %vm2092 = vcmp.eq.f32.partialorder %v2000, inf
    %v2093 = vsel %vm2092, %v2000, %v2091
    %vm2094 = vcmp.eq.f32.partialorder %v2000, 0.0
    %v2095 = vand.u32 %v2000, 2147483648
    %v2096 = vsel %vm2094, %v2095, %v2093
    %v2097 = vmul.f32 %v1362, %v1378
    %v2098 = vmul.f32 %v1363, %v1379
    %v2099 = vmul.f32 %v1362, %v1394
    %v2100 = vmul.f32 %v1363, %v1395
    %v2101 = vmul.f32 %v1362, %v1410
    %v2102 = vmul.f32 %v1363, %v1411
    %v2103 = vmul.f32 %v1378, %v1394
    %v2104 = vmul.f32 %v1379, %v1395
    %v2105 = vmul.f32 %v1378, %v1410
    %v2106 = vmul.f32 %v1379, %v1411
    %v2107 = vmul.f32 %v1394, %v1410
    %v2108 = vmul.f32 %v1395, %v1411
    %v2109 = vsel %vm1307, %v2097, 0.0
    %2110 = vadd.xlane.f32.xlu0 %v2109
    %v2111 = vpop.xlane.xlu0 %2110
    %v2112 = vsel %vm1307, %v2098, 0.0
    %2113 = vadd.xlane.f32.xlu0 %v2112
    %v2114 = vpop.xlane.xlu0 %2113
    %v2115 = vsel %vm1307, %v2099, 0.0
    %2116 = vadd.xlane.f32.xlu0 %v2115
    %v2117 = vpop.xlane.xlu0 %2116
    %v2118 = vsel %vm1307, %v2100, 0.0
    %2119 = vadd.xlane.f32.xlu0 %v2118
    %v2120 = vpop.xlane.xlu0 %2119
    %v2121 = vsel %vm1307, %v2101, 0.0
    %2122 = vadd.xlane.f32.xlu0 %v2121
    %v2123 = vpop.xlane.xlu0 %2122
    %v2124 = vsel %vm1307, %v2102, 0.0
    %2125 = vadd.xlane.f32.xlu0 %v2124
    %v2126 = vpop.xlane.xlu0 %2125
    %v2127 = vsel %vm1307, %v2103, 0.0
    %2128 = vadd.xlane.f32.xlu0 %v2127
    %v2129 = vpop.xlane.xlu0 %2128
    %v2130 = vsel %vm1307, %v2104, 0.0
    %2131 = vadd.xlane.f32.xlu0 %v2130
    %v2132 = vpop.xlane.xlu0 %2131
    %v2133 = vsel %vm1307, %v2105, 0.0
    %2134 = vadd.xlane.f32.xlu0 %v2133
    %v2135 = vpop.xlane.xlu0 %2134
    %v2136 = vsel %vm1307, %v2106, 0.0
    %2137 = vadd.xlane.f32.xlu0 %v2136
    %v2138 = vpop.xlane.xlu0 %2137
    %v2139 = vsel %vm1307, %v2107, 0.0
    %2140 = vadd.xlane.f32.xlu0 %v2139
    %v2141 = vpop.xlane.xlu0 %2140
    %v2142 = vsel %vm1307, %v2108, 0.0
    %2143 = vadd.xlane.f32.xlu0 %v2142
    %v2144 = vpop.xlane.xlu0 %2143
    %v2145 = vmul.f32 %v2012, %v2012
    %v2146 = vmul.f32 %v2024, %v2024
    %v2147 = vmul.f32 %v2012, %v2036
    %v2148 = vmul.f32 %v2024, %v2048
    %v2149 = vmul.f32 %v2012, %v2060
    %v2150 = vmul.f32 %v2024, %v2072
    %v2151 = vmul.f32 %v2012, %v2084
    %v2152 = vmul.f32 %v2024, %v2096
    %v2153 = vmul.f32 %v2036, %v2036
    %v2154 = vmul.f32 %v2048, %v2048
    %v2155 = vmul.f32 %v2036, %v2060
    %v2156 = vmul.f32 %v2048, %v2072
    %v2157 = vmul.f32 %v2036, %v2084
    %v2158 = vmul.f32 %v2048, %v2096
    %v2159 = vmul.f32 %v2060, %v2060
    %v2160 = vmul.f32 %v2072, %v2072
    %v2161 = vmul.f32 %v2060, %v2084
    %v2162 = vmul.f32 %v2072, %v2096
    %v2163 = vmul.f32 %v2084, %v2084
    %v2164 = vmul.f32 %v2096, %v2096
    %v2165 = vadd.f32 %v2145, 0.0001
    %v2166 = vadd.f32 %v2146, 0.0001
    %v2167 = vadd.f32 %v2147, 0.0001
    %v2168 = vadd.f32 %v2148, 0.0001
    %v2169 = vadd.f32 %v2149, 0.0001
    %v2170 = vadd.f32 %v2150, 0.0001
    %v2171 = vadd.f32 %v2151, 0.0001
    %v2172 = vadd.f32 %v2152, 0.0001
    %v2173 = vadd.f32 %v2153, 0.0001
    %v2174 = vadd.f32 %v2154, 0.0001
    %v2175 = vadd.f32 %v2155, 0.0001
    %v2176 = vadd.f32 %v2156, 0.0001
    %v2177 = vadd.f32 %v2157, 0.0001
    %v2178 = vadd.f32 %v2158, 0.0001
    %v2179 = vadd.f32 %v2159, 0.0001
    %v2180 = vadd.f32 %v2160, 0.0001
    %v2181 = vadd.f32 %v2161, 0.0001
    %v2182 = vadd.f32 %v2162, 0.0001
    %v2183 = vadd.f32 %v2163, 0.0001
    %v2184 = vadd.f32 %v2164, 0.0001
    %v2185 = vlaneseq
    %v2186 = vand.u32 %v2185, 127
    %vm2187 = vcmp.ne.s32.totalorder %v104, %v2186
    %v2188 = vsel %vm2187, 1, 0
    %v2189 = vcvt.s32.f32 %v2188
    %v2190 = vrcp.pop %v2165
    %v2191 = vmul.f32 %v2165, %v2190
    %v2192 = vsub.f32 1.0, %v2191
    %v2193 = vmul.f32 %v2190, %v2192
    %v2194 = vadd.f32 %v2190, %v2193
    %vm2195 = vweird.f32 %v2165
    %vm2196 = vweird.f32 %v2190
    %vm2197 = vmor %vm2195, %vm2196
    %v2198 = vsel %vm2197, %v2190, %v2194
    %v2199 = vand.u32 2147483647, %v2165
    %vm2200 = vcmp.eq.f32.partialorder %v2199, 8.507059e+37
    %v2201 = vand.u32 %v2165, 2147483648
    %v2202 = vor.u32 1.1754944e-38, %v2201
    %v2203 = vsel %vm2200, %v2202, %v2198
    %v2204 = vmul.f32 %v1979, %v2203
    %v2205 = vrcp.pop %v2166
    %v2206 = vmul.f32 %v2166, %v2205
    %v2207 = vsub.f32 1.0, %v2206
    %v2208 = vmul.f32 %v2205, %v2207
    %v2209 = vadd.f32 %v2205, %v2208
    %vm2210 = vweird.f32 %v2166
    %vm2211 = vweird.f32 %v2205
    %vm2212 = vmor %vm2210, %vm2211
    %v2213 = vsel %vm2212, %v2205, %v2209
    %v2214 = vand.u32 2147483647, %v2166
    %vm2215 = vcmp.eq.f32.partialorder %v2214, 8.507059e+37
    %v2216 = vand.u32 %v2166, 2147483648
    %v2217 = vor.u32 1.1754944e-38, %v2216
    %v2218 = vsel %vm2215, %v2217, %v2213
    %v2219 = vmul.f32 %v1982, %v2218
    %v2220 = vrcp.pop %v2167
    %v2221 = vmul.f32 %v2167, %v2220
    %v2222 = vsub.f32 1.0, %v2221
    %v2223 = vmul.f32 %v2220, %v2222
    %v2224 = vadd.f32 %v2220, %v2223
    %vm2225 = vweird.f32 %v2167
    %vm2226 = vweird.f32 %v2220
    %vm2227 = vmor %vm2225, %vm2226
    %v2228 = vsel %vm2227, %v2220, %v2224
    %v2229 = vand.u32 2147483647, %v2167
    %vm2230 = vcmp.eq.f32.partialorder %v2229, 8.507059e+37
    %v2231 = vand.u32 %v2167, 2147483648
    %v2232 = vor.u32 1.1754944e-38, %v2231
    %v2233 = vsel %vm2230, %v2232, %v2228
    %v2234 = vmul.f32 %v2111, %v2233
    %v2235 = vrcp.pop %v2168
    %v2236 = vmul.f32 %v2168, %v2235
    %v2237 = vsub.f32 1.0, %v2236
    %v2238 = vmul.f32 %v2235, %v2237
    %v2239 = vadd.f32 %v2235, %v2238
    %vm2240 = vweird.f32 %v2168
    %vm2241 = vweird.f32 %v2235
    %vm2242 = vmor %vm2240, %vm2241
    %v2243 = vsel %vm2242, %v2235, %v2239
    %v2244 = vand.u32 2147483647, %v2168
    %vm2245 = vcmp.eq.f32.partialorder %v2244, 8.507059e+37
    %v2246 = vand.u32 %v2168, 2147483648
    %v2247 = vor.u32 1.1754944e-38, %v2246
    %v2248 = vsel %vm2245, %v2247, %v2243
    %v2249 = vmul.f32 %v2114, %v2248
    %v2250 = vrcp.pop %v2169
    %v2251 = vmul.f32 %v2169, %v2250
    %v2252 = vsub.f32 1.0, %v2251
    %v2253 = vmul.f32 %v2250, %v2252
    %v2254 = vadd.f32 %v2250, %v2253
    %vm2255 = vweird.f32 %v2169
    %vm2256 = vweird.f32 %v2250
    %vm2257 = vmor %vm2255, %vm2256
    %v2258 = vsel %vm2257, %v2250, %v2254
    %v2259 = vand.u32 2147483647, %v2169
    %vm2260 = vcmp.eq.f32.partialorder %v2259, 8.507059e+37
    %v2261 = vand.u32 %v2169, 2147483648
    %v2262 = vor.u32 1.1754944e-38, %v2261
    %v2263 = vsel %vm2260, %v2262, %v2258
    %v2264 = vmul.f32 %v2117, %v2263
    %v2265 = vrcp.pop %v2170
    %v2266 = vmul.f32 %v2170, %v2265
    %v2267 = vsub.f32 1.0, %v2266
    %v2268 = vmul.f32 %v2265, %v2267
    %v2269 = vadd.f32 %v2265, %v2268
    %vm2270 = vweird.f32 %v2170
    %vm2271 = vweird.f32 %v2265
    %vm2272 = vmor %vm2270, %vm2271
    %v2273 = vsel %vm2272, %v2265, %v2269
    %v2274 = vand.u32 2147483647, %v2170
    %vm2275 = vcmp.eq.f32.partialorder %v2274, 8.507059e+37
    %v2276 = vand.u32 %v2170, 2147483648
    %v2277 = vor.u32 1.1754944e-38, %v2276
    %v2278 = vsel %vm2275, %v2277, %v2273
    %v2279 = vmul.f32 %v2120, %v2278
    %v2280 = vrcp.pop %v2171
    %v2281 = vmul.f32 %v2171, %v2280
    %v2282 = vsub.f32 1.0, %v2281
    %v2283 = vmul.f32 %v2280, %v2282
    %v2284 = vadd.f32 %v2280, %v2283
    %vm2285 = vweird.f32 %v2171
    %vm2286 = vweird.f32 %v2280
    %vm2287 = vmor %vm2285, %vm2286
    %v2288 = vsel %vm2287, %v2280, %v2284
    %v2289 = vand.u32 2147483647, %v2171
    %vm2290 = vcmp.eq.f32.partialorder %v2289, 8.507059e+37
    %v2291 = vand.u32 %v2171, 2147483648
    %v2292 = vor.u32 1.1754944e-38, %v2291
    %v2293 = vsel %vm2290, %v2292, %v2288
    %v2294 = vmul.f32 %v2123, %v2293
    %v2295 = vrcp.pop %v2172
    %v2296 = vmul.f32 %v2172, %v2295
    %v2297 = vsub.f32 1.0, %v2296
    %v2298 = vmul.f32 %v2295, %v2297
    %v2299 = vadd.f32 %v2295, %v2298
    %vm2300 = vweird.f32 %v2172
    %vm2301 = vweird.f32 %v2295
    %vm2302 = vmor %vm2300, %vm2301
    %v2303 = vsel %vm2302, %v2295, %v2299
    %v2304 = vand.u32 2147483647, %v2172
    %vm2305 = vcmp.eq.f32.partialorder %v2304, 8.507059e+37
    %v2306 = vand.u32 %v2172, 2147483648
    %v2307 = vor.u32 1.1754944e-38, %v2306
    %v2308 = vsel %vm2305, %v2307, %v2303
    %v2309 = vmul.f32 %v2126, %v2308
    %v2310 = vrcp.pop %v2173
    %v2311 = vmul.f32 %v2173, %v2310
    %v2312 = vsub.f32 1.0, %v2311
    %v2313 = vmul.f32 %v2310, %v2312
    %v2314 = vadd.f32 %v2310, %v2313
    %vm2315 = vweird.f32 %v2173
    %vm2316 = vweird.f32 %v2310
    %vm2317 = vmor %vm2315, %vm2316
    %v2318 = vsel %vm2317, %v2310, %v2314
    %v2319 = vand.u32 2147483647, %v2173
    %vm2320 = vcmp.eq.f32.partialorder %v2319, 8.507059e+37
    %v2321 = vand.u32 %v2173, 2147483648
    %v2322 = vor.u32 1.1754944e-38, %v2321
    %v2323 = vsel %vm2320, %v2322, %v2318
    %v2324 = vmul.f32 %v1985, %v2323
    %v2325 = vrcp.pop %v2174
    %v2326 = vmul.f32 %v2174, %v2325
    %v2327 = vsub.f32 1.0, %v2326
    %v2328 = vmul.f32 %v2325, %v2327
    %v2329 = vadd.f32 %v2325, %v2328
    %vm2330 = vweird.f32 %v2174
    %vm2331 = vweird.f32 %v2325
    %vm2332 = vmor %vm2330, %vm2331
    %v2333 = vsel %vm2332, %v2325, %v2329
    %v2334 = vand.u32 2147483647, %v2174
    %vm2335 = vcmp.eq.f32.partialorder %v2334, 8.507059e+37
    %v2336 = vand.u32 %v2174, 2147483648
    %v2337 = vor.u32 1.1754944e-38, %v2336
    %v2338 = vsel %vm2335, %v2337, %v2333
    %v2339 = vmul.f32 %v1988, %v2338
    %v2340 = vrcp.pop %v2175
    %v2341 = vmul.f32 %v2175, %v2340
    %v2342 = vsub.f32 1.0, %v2341
    %v2343 = vmul.f32 %v2340, %v2342
    %v2344 = vadd.f32 %v2340, %v2343
    %vm2345 = vweird.f32 %v2175
    %vm2346 = vweird.f32 %v2340
    %vm2347 = vmor %vm2345, %vm2346
    %v2348 = vsel %vm2347, %v2340, %v2344
    %v2349 = vand.u32 2147483647, %v2175
    %vm2350 = vcmp.eq.f32.partialorder %v2349, 8.507059e+37
    %v2351 = vand.u32 %v2175, 2147483648
    %v2352 = vor.u32 1.1754944e-38, %v2351
    %v2353 = vsel %vm2350, %v2352, %v2348
    %v2354 = vmul.f32 %v2129, %v2353
    %v2355 = vrcp.pop %v2176
    %v2356 = vmul.f32 %v2176, %v2355
    %v2357 = vsub.f32 1.0, %v2356
    %v2358 = vmul.f32 %v2355, %v2357
    %v2359 = vadd.f32 %v2355, %v2358
    %vm2360 = vweird.f32 %v2176
    %vm2361 = vweird.f32 %v2355
    %vm2362 = vmor %vm2360, %vm2361
    %v2363 = vsel %vm2362, %v2355, %v2359
    %v2364 = vand.u32 2147483647, %v2176
    %vm2365 = vcmp.eq.f32.partialorder %v2364, 8.507059e+37
    %v2366 = vand.u32 %v2176, 2147483648
    %v2367 = vor.u32 1.1754944e-38, %v2366
    %v2368 = vsel %vm2365, %v2367, %v2363
    %v2369 = vmul.f32 %v2132, %v2368
    %v2370 = vrcp.pop %v2177
    %v2371 = vmul.f32 %v2177, %v2370
    %v2372 = vsub.f32 1.0, %v2371
    %v2373 = vmul.f32 %v2370, %v2372
    %v2374 = vadd.f32 %v2370, %v2373
    %vm2375 = vweird.f32 %v2177
    %vm2376 = vweird.f32 %v2370
    %vm2377 = vmor %vm2375, %vm2376
    %v2378 = vsel %vm2377, %v2370, %v2374
    %v2379 = vand.u32 2147483647, %v2177
    %vm2380 = vcmp.eq.f32.partialorder %v2379, 8.507059e+37
    %v2381 = vand.u32 %v2177, 2147483648
    %v2382 = vor.u32 1.1754944e-38, %v2381
    %v2383 = vsel %vm2380, %v2382, %v2378
    %v2384 = vmul.f32 %v2135, %v2383
    %v2385 = vrcp.pop %v2178
    %v2386 = vmul.f32 %v2178, %v2385
    %v2387 = vsub.f32 1.0, %v2386
    %v2388 = vmul.f32 %v2385, %v2387
    %v2389 = vadd.f32 %v2385, %v2388
    %vm2390 = vweird.f32 %v2178
    %vm2391 = vweird.f32 %v2385
    %vm2392 = vmor %vm2390, %vm2391
    %v2393 = vsel %vm2392, %v2385, %v2389
    %v2394 = vand.u32 2147483647, %v2178
    %vm2395 = vcmp.eq.f32.partialorder %v2394, 8.507059e+37
    %v2396 = vand.u32 %v2178, 2147483648
    %v2397 = vor.u32 1.1754944e-38, %v2396
    %v2398 = vsel %vm2395, %v2397, %v2393
    %v2399 = vmul.f32 %v2138, %v2398
    %v2400 = vrcp.pop %v2179
    %v2401 = vmul.f32 %v2179, %v2400
    %v2402 = vsub.f32 1.0, %v2401
    %v2403 = vmul.f32 %v2400, %v2402
    %v2404 = vadd.f32 %v2400, %v2403
    %vm2405 = vweird.f32 %v2179
    %vm2406 = vweird.f32 %v2400
    %vm2407 = vmor %vm2405, %vm2406
    %v2408 = vsel %vm2407, %v2400, %v2404
    %v2409 = vand.u32 2147483647, %v2179
    %vm2410 = vcmp.eq.f32.partialorder %v2409, 8.507059e+37
    %v2411 = vand.u32 %v2179, 2147483648
    %v2412 = vor.u32 1.1754944e-38, %v2411
    %v2413 = vsel %vm2410, %v2412, %v2408
    %v2414 = vmul.f32 %v1991, %v2413
    %v2415 = vrcp.pop %v2180
    %v2416 = vmul.f32 %v2180, %v2415
    %v2417 = vsub.f32 1.0, %v2416
    %v2418 = vmul.f32 %v2415, %v2417
    %v2419 = vadd.f32 %v2415, %v2418
    %vm2420 = vweird.f32 %v2180
    %vm2421 = vweird.f32 %v2415
    %vm2422 = vmor %vm2420, %vm2421
    %v2423 = vsel %vm2422, %v2415, %v2419
    %v2424 = vand.u32 2147483647, %v2180
    %vm2425 = vcmp.eq.f32.partialorder %v2424, 8.507059e+37
    %v2426 = vand.u32 %v2180, 2147483648
    %v2427 = vor.u32 1.1754944e-38, %v2426
    %v2428 = vsel %vm2425, %v2427, %v2423
    %v2429 = vmul.f32 %v1994, %v2428
    %v2430 = vrcp.pop %v2181
    %v2431 = vmul.f32 %v2181, %v2430
    %v2432 = vsub.f32 1.0, %v2431
    %v2433 = vmul.f32 %v2430, %v2432
    %v2434 = vadd.f32 %v2430, %v2433
    %vm2435 = vweird.f32 %v2181
    %vm2436 = vweird.f32 %v2430
    %vm2437 = vmor %vm2435, %vm2436
    %v2438 = vsel %vm2437, %v2430, %v2434
    %v2439 = vand.u32 2147483647, %v2181
    %vm2440 = vcmp.eq.f32.partialorder %v2439, 8.507059e+37
    %v2441 = vand.u32 %v2181, 2147483648
    %v2442 = vor.u32 1.1754944e-38, %v2441
    %v2443 = vsel %vm2440, %v2442, %v2438
    %v2444 = vmul.f32 %v2141, %v2443
    %v2445 = vrcp.pop %v2182
    %v2446 = vmul.f32 %v2182, %v2445
    %v2447 = vsub.f32 1.0, %v2446
    %v2448 = vmul.f32 %v2445, %v2447
    %v2449 = vadd.f32 %v2445, %v2448
    %vm2450 = vweird.f32 %v2182
    %vm2451 = vweird.f32 %v2445
    %vm2452 = vmor %vm2450, %vm2451
    %v2453 = vsel %vm2452, %v2445, %v2449
    %v2454 = vand.u32 2147483647, %v2182
    %vm2455 = vcmp.eq.f32.partialorder %v2454, 8.507059e+37
    %v2456 = vand.u32 %v2182, 2147483648
    %v2457 = vor.u32 1.1754944e-38, %v2456
    %v2458 = vsel %vm2455, %v2457, %v2453
    %v2459 = vmul.f32 %v2144, %v2458
    %v2460 = vrcp.pop %v2183
    %v2461 = vmul.f32 %v2183, %v2460
    %v2462 = vsub.f32 1.0, %v2461
    %v2463 = vmul.f32 %v2460, %v2462
    %v2464 = vadd.f32 %v2460, %v2463
    %vm2465 = vweird.f32 %v2183
    %vm2466 = vweird.f32 %v2460
    %vm2467 = vmor %vm2465, %vm2466
    %v2468 = vsel %vm2467, %v2460, %v2464
    %v2469 = vand.u32 2147483647, %v2183
    %vm2470 = vcmp.eq.f32.partialorder %v2469, 8.507059e+37
    %v2471 = vand.u32 %v2183, 2147483648
    %v2472 = vor.u32 1.1754944e-38, %v2471
    %v2473 = vsel %vm2470, %v2472, %v2468
    %v2474 = vmul.f32 %v1997, %v2473
    %v2475 = vrcp.pop %v2184
    %v2476 = vmul.f32 %v2184, %v2475
    %v2477 = vsub.f32 1.0, %v2476
    %v2478 = vmul.f32 %v2475, %v2477
    %v2479 = vadd.f32 %v2475, %v2478
    %vm2480 = vweird.f32 %v2184
    %vm2481 = vweird.f32 %v2475
    %vm2482 = vmor %vm2480, %vm2481
    %v2483 = vsel %vm2482, %v2475, %v2479
    %v2484 = vand.u32 2147483647, %v2184
    %vm2485 = vcmp.eq.f32.partialorder %v2484, 8.507059e+37
    %v2486 = vand.u32 %v2184, 2147483648
    %v2487 = vor.u32 1.1754944e-38, %v2486
    %v2488 = vsel %vm2485, %v2487, %v2483
    %v2489 = vmul.f32 %v2000, %v2488
    %v2490 = vperm.slane %v2189, 0
    %v2491 = vlaneseq
    %v2492 = vshrl.u32 %v2491, 7
    %2494 = vset.pattern.permute.xlu0 %v2492
    %2495 = vperm.xlu0 %2494, %v2490
    %v2496 = vpop.permute.xlu0 %2495
    %v2497 = vperm.slane %v2189, 1
    %v2498 = vlaneseq
    %v2499 = vshrl.u32 %v2498, 7
    %2501 = vset.pattern.permute.xlu0 %v2499
    %2502 = vperm.xlu0 %2501, %v2497
    %v2503 = vpop.permute.xlu0 %2502
    %v2504 = vperm.slane %v2189, 2
    %v2505 = vlaneseq
    %v2506 = vshrl.u32 %v2505, 7
    %2508 = vset.pattern.permute.xlu0 %v2506
    %2509 = vperm.xlu0 %2508, %v2504
    %v2510 = vpop.permute.xlu0 %2509
    %v2511 = vperm.slane %v2189, 3
    %v2512 = vlaneseq
    %v2513 = vshrl.u32 %v2512, 7
    %2515 = vset.pattern.permute.xlu0 %v2513
    %2516 = vperm.xlu0 %2515, %v2511
    %v2517 = vpop.permute.xlu0 %2516
    %v2522 = vperm.slane %v2496, 0
    %v2523 = vperm.slane %v2496, 1
    %v2524 = vperm.slane %v2496, 2
    %v2525 = vperm.slane %v2496, 3
    %v2526 = vperm.slane %v2503, 0
    %v2527 = vperm.slane %v2503, 1
    %v2528 = vperm.slane %v2503, 2
    %v2529 = vperm.slane %v2503, 3
    %v2530 = vperm.slane %v2510, 0
    %v2531 = vperm.slane %v2510, 1
    %v2532 = vperm.slane %v2510, 2
    %v2533 = vperm.slane %v2510, 3
    %v2534 = vperm.slane %v2517, 0
    %v2535 = vperm.slane %v2517, 1
    %v2536 = vperm.slane %v2517, 2
    %v2537 = vperm.slane %v2517, 3
    %v2554 = vmul.f32 %v2204, %v2522
    %v2555 = vmul.f32 %v2219, %v2522
    %v2556 = vmul.f32 %v2234, %v2523
    %v2557 = vmul.f32 %v2249, %v2523
    %v2558 = vmul.f32 %v2264, %v2524
    %v2559 = vmul.f32 %v2279, %v2524
    %v2560 = vmul.f32 %v2294, %v2525
    %v2561 = vmul.f32 %v2309, %v2525
    %v2562 = vmul.f32 %v2234, %v2526
    %v2563 = vmul.f32 %v2249, %v2526
    %v2564 = vmul.f32 %v2324, %v2527
    %v2565 = vmul.f32 %v2339, %v2527
    %v2566 = vmul.f32 %v2354, %v2528
    %v2567 = vmul.f32 %v2369, %v2528
    %v2568 = vmul.f32 %v2384, %v2529
    %v2569 = vmul.f32 %v2399, %v2529
    %v2570 = vmul.f32 %v2264, %v2530
    %v2571 = vmul.f32 %v2279, %v2530
    %v2572 = vmul.f32 %v2354, %v2531
    %v2573 = vmul.f32 %v2369, %v2531
    %v2574 = vmul.f32 %v2414, %v2532
    %v2575 = vmul.f32 %v2429, %v2532
    %v2576 = vmul.f32 %v2444, %v2533
    %v2577 = vmul.f32 %v2459, %v2533
    %v2578 = vmul.f32 %v2294, %v2534
    %v2579 = vmul.f32 %v2309, %v2534
    %v2580 = vmul.f32 %v2384, %v2535
    %v2581 = vmul.f32 %v2399, %v2535
    %v2582 = vmul.f32 %v2444, %v2536
    %v2583 = vmul.f32 %v2459, %v2536
    %v2584 = vmul.f32 %v2474, %v2537
    %v2585 = vmul.f32 %v2489, %v2537
    %v2586 = vmax.f32 %v2554, 0.0
    %v2587 = vmax.f32 %v2555, 0.0
    %v2588 = vmax.f32 %v2556, 0.0
    %v2589 = vmax.f32 %v2557, 0.0
    %v2590 = vmax.f32 %v2558, 0.0
    %v2591 = vmax.f32 %v2559, 0.0
    %v2592 = vmax.f32 %v2560, 0.0
    %v2593 = vmax.f32 %v2561, 0.0
    %v2594 = vmax.f32 %v2562, 0.0
    %v2595 = vmax.f32 %v2563, 0.0
    %v2596 = vmax.f32 %v2564, 0.0
    %v2597 = vmax.f32 %v2565, 0.0
    %v2598 = vmax.f32 %v2566, 0.0
    %v2599 = vmax.f32 %v2567, 0.0
    %v2600 = vmax.f32 %v2568, 0.0
    %v2601 = vmax.f32 %v2569, 0.0
    %v2602 = vmax.f32 %v2570, 0.0
    %v2603 = vmax.f32 %v2571, 0.0
    %v2604 = vmax.f32 %v2572, 0.0
    %v2605 = vmax.f32 %v2573, 0.0
    %v2606 = vmax.f32 %v2574, 0.0
    %v2607 = vmax.f32 %v2575, 0.0
    %v2608 = vmax.f32 %v2576, 0.0
    %v2609 = vmax.f32 %v2577, 0.0
    %v2610 = vmax.f32 %v2578, 0.0
    %v2611 = vmax.f32 %v2579, 0.0
    %v2612 = vmax.f32 %v2580, 0.0
    %v2613 = vmax.f32 %v2581, 0.0
    %v2614 = vmax.f32 %v2582, 0.0
    %v2615 = vmax.f32 %v2583, 0.0
    %v2616 = vmax.f32 %v2584, 0.0
    %v2617 = vmax.f32 %v2585, 0.0
    %v2618 = vmin.f32 %v2586, 1.0
    %v2619 = vmin.f32 %v2587, 1.0
    %v2620 = vmin.f32 %v2588, 1.0
    %v2621 = vmin.f32 %v2589, 1.0
    %v2622 = vmin.f32 %v2590, 1.0
    %v2623 = vmin.f32 %v2591, 1.0
    %v2624 = vmin.f32 %v2592, 1.0
    %v2625 = vmin.f32 %v2593, 1.0
    %v2626 = vmin.f32 %v2594, 1.0
    %v2627 = vmin.f32 %v2595, 1.0
    %v2628 = vmin.f32 %v2596, 1.0
    %v2629 = vmin.f32 %v2597, 1.0
    %v2630 = vmin.f32 %v2598, 1.0
    %v2631 = vmin.f32 %v2599, 1.0
    %v2632 = vmin.f32 %v2600, 1.0
    %v2633 = vmin.f32 %v2601, 1.0
    %v2634 = vmin.f32 %v2602, 1.0
    %v2635 = vmin.f32 %v2603, 1.0
    %v2636 = vmin.f32 %v2604, 1.0
    %v2637 = vmin.f32 %v2605, 1.0
    %v2638 = vmin.f32 %v2606, 1.0
    %v2639 = vmin.f32 %v2607, 1.0
    %v2640 = vmin.f32 %v2608, 1.0
    %v2641 = vmin.f32 %v2609, 1.0
    %v2642 = vmin.f32 %v2610, 1.0
    %v2643 = vmin.f32 %v2611, 1.0
    %v2644 = vmin.f32 %v2612, 1.0
    %v2645 = vmin.f32 %v2613, 1.0
    %v2646 = vmin.f32 %v2614, 1.0
    %v2647 = vmin.f32 %v2615, 1.0
    %v2648 = vmin.f32 %v2616, 1.0
    %v2649 = vmin.f32 %v2617, 1.0
    %2682 = vset.pattern.permute.xlu0 0
    %2683 = vperm.xlu0 %2682, %v2618
    %v2684 = vpop.permute.xlu0 %2683
    %2685 = vset.pattern.permute.xlu0 0
    %2686 = vperm.xlu0 %2685, %v2619
    %v2687 = vpop.permute.xlu0 %2686
    %2688 = vset.pattern.permute.xlu0 0
    %2689 = vperm.xlu0 %2688, %v2620
    %v2690 = vpop.permute.xlu0 %2689
    %2691 = vset.pattern.permute.xlu0 0
    %2692 = vperm.xlu0 %2691, %v2621
    %v2693 = vpop.permute.xlu0 %2692
    %2694 = vset.pattern.permute.xlu0 0
    %2695 = vperm.xlu0 %2694, %v2622
    %v2696 = vpop.permute.xlu0 %2695
    %2697 = vset.pattern.permute.xlu0 0
    %2698 = vperm.xlu0 %2697, %v2623
    %v2699 = vpop.permute.xlu0 %2698
    %2700 = vset.pattern.permute.xlu0 0
    %2701 = vperm.xlu0 %2700, %v2624
    %v2702 = vpop.permute.xlu0 %2701
    %2703 = vset.pattern.permute.xlu0 0
    %2704 = vperm.xlu0 %2703, %v2625
    %v2705 = vpop.permute.xlu0 %2704
    %2706 = vset.pattern.permute.xlu0 0
    %2707 = vperm.xlu0 %2706, %v2626
    %v2708 = vpop.permute.xlu0 %2707
    %2709 = vset.pattern.permute.xlu0 0
    %2710 = vperm.xlu0 %2709, %v2627
    %v2711 = vpop.permute.xlu0 %2710
    %2712 = vset.pattern.permute.xlu0 0
    %2713 = vperm.xlu0 %2712, %v2628
    %v2714 = vpop.permute.xlu0 %2713
    %2715 = vset.pattern.permute.xlu0 0
    %2716 = vperm.xlu0 %2715, %v2629
    %v2717 = vpop.permute.xlu0 %2716
    %2718 = vset.pattern.permute.xlu0 0
    %2719 = vperm.xlu0 %2718, %v2630
    %v2720 = vpop.permute.xlu0 %2719
    %2721 = vset.pattern.permute.xlu0 0
    %2722 = vperm.xlu0 %2721, %v2631
    %v2723 = vpop.permute.xlu0 %2722
    %2724 = vset.pattern.permute.xlu0 0
    %2725 = vperm.xlu0 %2724, %v2632
    %v2726 = vpop.permute.xlu0 %2725
    %2727 = vset.pattern.permute.xlu0 0
    %2728 = vperm.xlu0 %2727, %v2633
    %v2729 = vpop.permute.xlu0 %2728
    %2730 = vset.pattern.permute.xlu0 0
    %2731 = vperm.xlu0 %2730, %v2634
    %v2732 = vpop.permute.xlu0 %2731
    %2733 = vset.pattern.permute.xlu0 0
    %2734 = vperm.xlu0 %2733, %v2635
    %v2735 = vpop.permute.xlu0 %2734
    %2736 = vset.pattern.permute.xlu0 0
    %2737 = vperm.xlu0 %2736, %v2636
    %v2738 = vpop.permute.xlu0 %2737
    %2739 = vset.pattern.permute.xlu0 0
    %2740 = vperm.xlu0 %2739, %v2637
    %v2741 = vpop.permute.xlu0 %2740
    %2742 = vset.pattern.permute.xlu0 0
    %2743 = vperm.xlu0 %2742, %v2638
    %v2744 = vpop.permute.xlu0 %2743
    %2745 = vset.pattern.permute.xlu0 0
    %2746 = vperm.xlu0 %2745, %v2639
    %v2747 = vpop.permute.xlu0 %2746
    %2748 = vset.pattern.permute.xlu0 0
    %2749 = vperm.xlu0 %2748, %v2640
    %v2750 = vpop.permute.xlu0 %2749
    %2751 = vset.pattern.permute.xlu0 0
    %2752 = vperm.xlu0 %2751, %v2641
    %v2753 = vpop.permute.xlu0 %2752
    %2754 = vset.pattern.permute.xlu0 0
    %2755 = vperm.xlu0 %2754, %v2642
    %v2756 = vpop.permute.xlu0 %2755
    %2757 = vset.pattern.permute.xlu0 0
    %2758 = vperm.xlu0 %2757, %v2643
    %v2759 = vpop.permute.xlu0 %2758
    %2760 = vset.pattern.permute.xlu0 0
    %2761 = vperm.xlu0 %2760, %v2644
    %v2762 = vpop.permute.xlu0 %2761
    %2763 = vset.pattern.permute.xlu0 0
    %2764 = vperm.xlu0 %2763, %v2645
    %v2765 = vpop.permute.xlu0 %2764
    %2766 = vset.pattern.permute.xlu0 0
    %2767 = vperm.xlu0 %2766, %v2646
    %v2768 = vpop.permute.xlu0 %2767
    %2769 = vset.pattern.permute.xlu0 0
    %2770 = vperm.xlu0 %2769, %v2647
    %v2771 = vpop.permute.xlu0 %2770
    %2772 = vset.pattern.permute.xlu0 0
    %2773 = vperm.xlu0 %2772, %v2648
    %v2774 = vpop.permute.xlu0 %2773
    %2775 = vset.pattern.permute.xlu0 0
    %2776 = vperm.xlu0 %2775, %v2649
    %v2777 = vpop.permute.xlu0 %2776
    %v2778 = vperm.slane %v2684, %v2186
    %v2779 = vadd.s32 %v2186, 4294967288
    %v2780 = vperm.slane %v2687, %v2779
    %vm2781 = vcmask 130112
    %v2782 = vsel %vm2781, %v2780, %v2778
    %v2783 = vperm.slane %v2690, %v2186
    %v2784 = vperm.slane %v2693, %v2779
    %v2785 = vsel %vm2781, %v2784, %v2783
    %v2786 = vperm.slane %v2696, %v2186
    %v2787 = vperm.slane %v2699, %v2779
    %v2788 = vsel %vm2781, %v2787, %v2786
    %v2789 = vperm.slane %v2702, %v2186
    %v2790 = vperm.slane %v2705, %v2779
    %v2791 = vsel %vm2781, %v2790, %v2789
    %v2792 = vperm.slane %v2708, %v2186
    %v2793 = vperm.slane %v2711, %v2779
    %v2794 = vsel %vm2781, %v2793, %v2792
    %v2795 = vperm.slane %v2714, %v2186
    %v2796 = vperm.slane %v2717, %v2779
    %v2797 = vsel %vm2781, %v2796, %v2795
    %v2798 = vperm.slane %v2720, %v2186
    %v2799 = vperm.slane %v2723, %v2779
    %v2800 = vsel %vm2781, %v2799, %v2798
    %v2801 = vperm.slane %v2726, %v2186
    %v2802 = vperm.slane %v2729, %v2779
    %v2803 = vsel %vm2781, %v2802, %v2801
    %v2804 = vperm.slane %v2732, %v2186
    %v2805 = vperm.slane %v2735, %v2779
    %v2806 = vsel %vm2781, %v2805, %v2804
    %v2807 = vperm.slane %v2738, %v2186
    %v2808 = vperm.slane %v2741, %v2779
    %v2809 = vsel %vm2781, %v2808, %v2807
    %v2810 = vperm.slane %v2744, %v2186
    %v2811 = vperm.slane %v2747, %v2779
    %v2812 = vsel %vm2781, %v2811, %v2810
    %v2813 = vperm.slane %v2750, %v2186
    %v2814 = vperm.slane %v2753, %v2779
    %v2815 = vsel %vm2781, %v2814, %v2813
    %v2816 = vperm.slane %v2756, %v2186
    %v2817 = vperm.slane %v2759, %v2779
    %v2818 = vsel %vm2781, %v2817, %v2816
    %v2819 = vperm.slane %v2762, %v2186
    %v2820 = vperm.slane %v2765, %v2779
    %v2821 = vsel %vm2781, %v2820, %v2819
    %v2822 = vperm.slane %v2768, %v2186
    %v2823 = vperm.slane %v2771, %v2779
    %v2824 = vsel %vm2781, %v2823, %v2822
    %v2825 = vperm.slane %v2774, %v2186
    %v2826 = vperm.slane %v2777, %v2779
    %v2827 = vsel %vm2781, %v2826, %v2825
    %v2828 = vsel %vm1929, %v2785, %v2782
    %v2829 = vsel %vm1931, %v2788, %v2828
    %v2830 = vsel %vm1933, %v2791, %v2829
    %v2831 = vsel %vm1929, %v2797, %v2794
    %v2832 = vsel %vm1931, %v2800, %v2831
    %v2833 = vsel %vm1933, %v2803, %v2832
    %v2834 = vsel %vm1929, %v2809, %v2806
    %v2835 = vsel %vm1931, %v2812, %v2834
    %v2836 = vsel %vm1933, %v2815, %v2835
    %v2837 = vsel %vm1929, %v2821, %v2818
    %v2838 = vsel %vm1931, %v2824, %v2837
    %v2839 = vsel %vm1933, %v2827, %v2838
    %vm2844 = vcmask 125952
    %v2845 = vsel %vm2844, %v2830, 0.0
    %v2846 = vsel %vm2844, %v2833, 0.0
    %v2847 = vadd.f32 %v2845, %v2846
    %v2848 = vsel %vm2844, %v2836, 0.0
    %v2849 = vadd.f32 %v2847, %v2848
    %v2850 = vsel %vm2844, %v2839, 0.0
    %v2851 = vadd.f32 %v2849, %v2850
    %2852 = vadd.xlane.f32.xlu0 %v2851
    %v2853 = vpop.xlane.xlu0 %2852
    %v2854 = vrot.slane %v2853, 4
    %v2855 = vadd.f32 %v2853, %v2854
    %v2856 = vrot.slane %v2855, 2
    %v2857 = vadd.f32 %v2855, %v2856
    %v2858 = vrot.slane %v2857, 1
    %v2859 = vadd.f32 %v2857, %v2858
    %s2860 = vtos %v2859
    %v2861 = vrcp.pop 256.0
    %v2862 = vmul.f32 256.0, %v2861
    %v2863 = vsub.f32 1.0, %v2862
    %v2864 = vmul.f32 %v2861, %v2863
    %v2865 = vadd.f32 %v2861, %v2864
    %vm2866 = vweird.f32 %v2861
    %v2867 = vsel %vm2866, %v2861, %v2865
    %s2868 = vtos %v2867
    %s2869 = smul.f32 %s2860, %s2868
    %s2870 = smul.f32 %s2869, 0.01
    %s2871 = sadd.f32 %s1968, %s2870
    %v2872 = vstv %s2871
    %vm2873 = vcmask 0
    %2874 = vst.msk [vmem:[#allocation2] sm:$0x1] %vm2873, %v2872
    // Predicated region
    $region50: #{modeler_forward.1} parent=1 // pred_check
      _
    $region51: #{modeler_forward.1} parent=1 // pred_check_branch
      %2876 = sbr.rel (0) target = $region53
    $region52: #{modeler_forward.1} parent=1 // pred_region
      %2878 = vsyncadd [#allocation3], 0
      %s2880 = sshll.u32 [#allocation2], 4
      %s2881 = int_to_ptr.vmem [resolvable:$true] %s2880
      %s2882 = sshll.u32 %s12, 4
      %s2883 = int_to_ptr.hbm [resolvable:$true] %s2882
      %2885 = dma.vmem_to_hbm [thread:$0]  %s2881, 16, %s2883, [#allocation3]
    $region53: #{modeler_forward.1} parent=1 // pred_fallthru
      _
    // Predicated region
    $region54: #{modeler_forward.1} parent=1 // pred_check
      _
    $region55: #{modeler_forward.1} parent=1 // pred_check_branch
      %2887 = sbr.rel (0) target = $region57
    $region56: #{modeler_forward.1} parent=1 // pred_region
      %2889 = dma.done [#allocation3], 16
    $region57: #{modeler_forward.1} parent=1 // pred_fallthru
      _
    %2890 = vsyncpa [#allocation3], 1

</llo_original>
